<compile_context>
chip_gen: v5e
topology: v5e:2x2
jax: 0.10.0
libtpu: 0.0.40
codegen_flags: <defaults>
</compile_context>

<pallas_src>
import functools

import jax
import jax.numpy as jnp
from jax.experimental import pallas as pl
from jax.experimental.pallas import tpu as pltpu


def _rup(x, m):
    return ((x + m - 1) // m) * m


# ----------------------------------------------------------------------------- kernel


def _gnn_kernel(a_in_ref, a_out_ref, h_ref,
                w_h_ref, b_h_ref, w_in_ref, w_out_ref, b_gi_ref,
                out_ref, *, step, mm_dtype, adj_on_vpu):
    Bblk, Np, _ = a_in_ref.shape
    M, Hp = h_ref.shape                       # M == Bblk * Np, Hp % 128 == 0

    # Weights loaded once per grid step (resident in VMEM across the step loop).
    w_h = w_h_ref[...]                        # [Hp, 5*Hp]  (edge_in|edge_out|gh_r|gh_i|gh_n)
    w_in = w_in_ref[...]                      # [Hp, 3*Hp]  gate-input weights (in half)
    w_out = w_out_ref[...]                    # [Hp, 3*Hp]  gate-input weights (out half)

    # Hoisted bias broadcasts (JAX does not CSE broadcast_in_dim across the loop).
    b_h = jnp.broadcast_to(b_h_ref[...], (M, 5 * Hp))
    b_gi = jnp.broadcast_to(b_gi_ref[...], (M, 3 * Hp))

    # A halves: already in the dtype the chosen contraction path wants.
    a_in = a_in_ref[...]                      # [Bblk, Np, Np]
    a_out = a_out_ref[...]

    def adj(a, e):
        # a: [Bblk, Np, Np], e: [Bblk, Np, Hp] (f32) -> [Bblk, Np, Hp] (f32)
        if adj_on_vpu:
            # Tiny-N path: Np broadcast-FMAs on the VPU, MXU stays free for the
            # big fused gate matmuls.
            acc = a[:, :, 0:1] * e[:, 0:1, :]
            for j in range(1, Np):
                acc = acc + a[:, :, j:j + 1] * e[:, j:j + 1, :]
            return acc
        # Large-N path: batched MXU matmul (contraction dim is already A's lane
        # axis, so no in-kernel transpose is generated).
        return jnp.einsum('bij,bjh->bih', a, e.astype(a.dtype),
                          preferred_element_type=jnp.float32)

    def cell(h):
        h_mm = h.astype(mm_dtype)

        # One fused MXU matmul for all five h-side projections.
        big = jnp.dot(h_mm, w_h, preferred_element_type=jnp.float32) + b_h
        edge_in = big[:, 0 * Hp:1 * Hp].reshape(Bblk, Np, Hp)
        edge_out = big[:, 1 * Hp:2 * Hp].reshape(Bblk, Np, Hp)
        h_r = big[:, 2 * Hp:3 * Hp]
        h_i = big[:, 3 * Hp:4 * Hp]
        h_n = big[:, 4 * Hp:5 * Hp]

        inp_in = adj(a_in, edge_in).reshape(M, Hp)
        inp_out = adj(a_out, edge_out).reshape(M, Hp)

        # Fused gate-input projections (r|i|n in 128-aligned lane slots);
        # b_iah/b_oah were folded into b_gi in the wrapper.
        gi = (jnp.dot(inp_in.astype(mm_dtype), w_in, preferred_element_type=jnp.float32)
              + jnp.dot(inp_out.astype(mm_dtype), w_out, preferred_element_type=jnp.float32)
              + b_gi)
        i_r = gi[:, 0 * Hp:1 * Hp]
        i_i = gi[:, 1 * Hp:2 * Hp]
        i_n = gi[:, 2 * Hp:3 * Hp]

        # Gate math stays in f32 on every generation (no bf16 EUP/VPU on v5e).
        resetgate = jax.nn.sigmoid(i_r + h_r)
        inputgate = jax.nn.sigmoid(i_i + h_i)
        newgate = jnp.tanh(i_n + resetgate * h_n)
        return newgate + inputgate * (h - newgate)

    h0 = h_ref[...].astype(jnp.float32)
    h_final = jax.lax.fori_loop(0, step, lambda _, h: cell(h), h0,
                                unroll=step <= 4)
    out_ref[...] = h_final.astype(out_ref.dtype)


# ----------------------------------------------------------------------------- packing


def _pack_params(params, H, Hp, mm_dtype):
    """Pre-transpose / pre-split / zero-pad weights into fused 128-aligned slabs."""
    f32 = jnp.float32

    def padw(w_t):                             # [H_in, H_out] -> [Hp, Hp]
        return jnp.zeros((Hp, Hp), f32).at[:H, :H].set(w_t.astype(f32))

    def padb(b):                               # [H] -> [Hp]
        return jnp.zeros((Hp,), f32).at[:H].set(b.astype(f32))

    w_ein = params["w_edge_in"].T
    w_eout = params["w_edge_out"].T
    w_hh_g = params["w_hh"].reshape(3, H, H)
    w_gh = [w_hh_g[g].T for g in range(3)]

    # [Hp, 5*Hp] lane slots: [edge_in | edge_out | gh_r | gh_i | gh_n]
    w_h_big = jnp.concatenate([padw(w) for w in [w_ein, w_eout] + w_gh], axis=1)

    b_hh_g = params["b_hh"].reshape(3, H)
    b_h_big = jnp.concatenate(
        [padb(params["b_edge_in"]), padb(params["b_edge_out"]),
         padb(b_hh_g[0]), padb(b_hh_g[1]), padb(b_hh_g[2])]).reshape(1, 5 * Hp)

    w_ih_g = params["w_ih"].reshape(3, H, 2 * H)
    w_gi_in = [w_ih_g[g, :, :H].T for g in range(3)]       # [H_in, H_out]
    w_gi_out = [w_ih_g[g, :, H:].T for g in range(3)]
    w_in_big = jnp.concatenate([padw(w) for w in w_gi_in], axis=1)    # [Hp, 3*Hp]
    w_out_big = jnp.concatenate([padw(w) for w in w_gi_out], axis=1)  # [Hp, 3*Hp]

    # Fold b_iah / b_oah into the gate-input bias (exact up to f32 associativity):
    #   gi_g = inp_in @ Wg_in + inp_out @ Wg_out
    #          + (b_iah @ Wg_in + b_oah @ Wg_out + b_ih_g)
    b_ih_g = params["b_ih"].reshape(3, H)
    b_gi = [params["b_iah"] @ w_gi_in[g] + params["b_oah"] @ w_gi_out[g] + b_ih_g[g]
            for g in range(3)]
    b_gi_big = jnp.concatenate([padb(b) for b in b_gi]).reshape(1, 3 * Hp)

    return (w_h_big.astype(mm_dtype), b_h_big,
            w_in_big.astype(mm_dtype), w_out_big.astype(mm_dtype), b_gi_big)


# ----------------------------------------------------------------------------- wrapper


def gnn_forward(A, hidden, params, step=1, batch_block=None, matmul_dtype=None):
    """Equivalent of GNN.forward: `step` fused GNNCell applications in one kernel."""
    B, N, H = hidden.shape
    assert A.shape == (B, N, 2 * N)

    Hp = _rup(H, 128)                 # lane-dense hidden size
    Np = _rup(N, 8)                   # sublane-aligned node count
    if matmul_dtype is None:
        # bf16 MXU operands for large H (f32 accumulation + f32 gate math kept).
        matmul_dtype = jnp.bfloat16 if H >= 128 else jnp.float32
    adj_on_vpu = Np <= 32             # tiny per-batch matmuls -> VPU broadcast-FMA
    a_dtype = jnp.float32 if adj_on_vpu else matmul_dtype

    # ---- VMEM-aware block sizing + explicit scoped-VMEM limit ----
    try:
        vmem_cap = int(pltpu.get_tpu_info().vmem_capacity_bytes)
    except Exception:                 # fall back to the smallest generation (v7x)
        vmem_cap = 64 * 1024 * 1024
    vmem_limit = min(int(vmem_cap * 0.75), 100 * 1024 * 1024)
    vmem_budget = int(vmem_cap * 0.55)   # headroom for compiler scratch

    a_isz = jnp.dtype(a_dtype).itemsize
    w_isz = jnp.dtype(matmul_dtype).itemsize

    def block_bytes(bblk):
        mblk = bblk * Np
        a_blk = bblk * Np * _rup(Np, 128) * a_isz             # one lane-padded A half
        h_blk = mblk * Hp * 4
        io = 2 * (2 * a_blk + h_blk) + 2 * h_blk              # double-buffered in + out
        interm = 16 * mblk * Hp * 4                           # big/gi/inp/gates/bias bcasts
        weights = 2 * (11 * Hp * Hp + 8 * Hp) * w_isz
        return io + interm + weights

    if batch_block is None:
        grid_n = 1
        if B > 1:
            grid_n = 2                           # keep both v7x TensorCores busy
        if B >= 8 and (B // 4) * Np >= 256:
            grid_n = 4                           # enough steps to hide the A DMA stream
        while pl.cdiv(B, grid_n) > 1 and block_bytes(pl.cdiv(B, grid_n)) > vmem_budget:
            grid_n += 1
        batch_block = pl.cdiv(B, grid_n)
    batch_block = max(1, min(int(batch_block), B))
    B_pad = _rup(B, batch_block)                 # pad batch instead of shrinking blocks
    grid = (B_pad // batch_block,)
    Mblk = batch_block * Np

    # ---- zero-pad inputs (batch, nodes, lanes) and pack weights ----
    a_in = jnp.zeros((B_pad, Np, Np), a_dtype).at[:B, :N, :N].set(
        A[:, :, :N].astype(a_dtype))
    a_out = jnp.zeros((B_pad, Np, Np), a_dtype).at[:B, :N, :N].set(
        A[:, :, N:2 * N].astype(a_dtype))
    h_flat = jnp.zeros((B_pad, Np, Hp), hidden.dtype).at[:B, :N, :H].set(
        hidden).reshape(B_pad * Np, Hp)

    w_h_big, b_h_big, w_in_big, w_out_big, b_gi_big = _pack_params(
        params, H, Hp, matmul_dtype)

    def const_spec(arr):
        nd = arr.ndim
        return pl.BlockSpec(arr.shape, lambda b, _nd=nd: (0,) * _nd)

    grid_spec = pltpu.PrefetchScalarGridSpec(
        num_scalar_prefetch=0,
        grid=grid,
        in_specs=[
            pl.BlockSpec((batch_block, Np, Np), lambda b: (b, 0, 0)),   # A (in half)
            pl.BlockSpec((batch_block, Np, Np), lambda b: (b, 0, 0)),   # A (out half)
            pl.BlockSpec((Mblk, Hp), lambda b: (b, 0)),                 # hidden (flat)
            const_spec(w_h_big), const_spec(b_h_big),
            const_spec(w_in_big), const_spec(w_out_big),
            const_spec(b_gi_big),
        ],
        out_specs=pl.BlockSpec((Mblk, Hp), lambda b: (b, 0)),
    )

    out_flat = pl.pallas_call(
        functools.partial(_gnn_kernel, step=step, mm_dtype=matmul_dtype,
                          adj_on_vpu=adj_on_vpu),
        out_shape=jax.ShapeDtypeStruct((B_pad * Np, Hp), hidden.dtype),
        grid_spec=grid_spec,
        input_output_aliases={2: 0},            # hidden block is fully overwritten
        compiler_params=pltpu.CompilerParams(
            dimension_semantics=("parallel",),
            vmem_limit_bytes=vmem_limit),
    )(a_in, a_out, h_flat, w_h_big, b_h_big, w_in_big, w_out_big, b_gi_big)

    return out_flat.reshape(B_pad, Np, Hp)[:B, :N, :H]


# ----------------------------------------------------------------------------- reference / test


def init_params(hidden_size, key):
    """Deterministic synthetic parameter init (uniform(-stdv, stdv), stdv=1/sqrt(H))."""
    H = hidden_size
    stdv = 1.0 / (H ** 0.5)
    names_shapes = [
        ("w_ih", (3 * H, 2 * H)),
        ("w_hh", (3 * H, H)),
        ("b_ih", (3 * H,)),
        ("b_hh", (3 * H,)),
        ("b_iah", (H,)),
        ("b_oah", (H,)),
        ("w_edge_in", (H, H)),
        ("b_edge_in", (H,)),
        ("w_edge_out", (H, H)),
        ("b_edge_out", (H,)),
        # linear_edge_f exists in the module but is unused in forward(); skipped.
    ]
    params = {}
    keys = jax.random.split(key, len(names_shapes))
    for k, (name, shape) in zip(keys, names_shapes):
        params[name] = jax.random.uniform(k, shape, jnp.float32, -stdv, stdv)
    return params


def gnn_reference(A, hidden, params, step=1):
    """Pure-JAX reference mirroring the PyTorch forward (for sanity checking)."""
    H = hidden.shape[-1]
    N = A.shape[1]
    for _ in range(step):
        edge_in = hidden @ params["w_edge_in"].T + params["b_edge_in"]
        edge_out = hidden @ params["w_edge_out"].T + params["b_edge_out"]
        input_in = jnp.einsum("bij,bjh->bih", A[:, :, :N], edge_in) + params["b_iah"]
        input_out = jnp.einsum("bij,bjh->bih", A[:, :, N:2 * N], edge_out) + params["b_oah"]
        inputs = jnp.concatenate([input_in, input_out], axis=2)
        gi = inputs @ params["w_ih"].T + params["b_ih"]
        gh = hidden @ params["w_hh"].T + params["b_hh"]
        i_r, i_i, i_n = gi[..., :H], gi[..., H:2 * H], gi[..., 2 * H:]
        h_r, h_i, h_n = gh[..., :H], gh[..., H:2 * H], gh[..., 2 * H:]
        resetgate = jax.nn.sigmoid(i_r + h_r)
        inputgate = jax.nn.sigmoid(i_i + h_i)
        newgate = jnp.tanh(i_n + resetgate * h_n)
        hidden = newgate + inputgate * (hidden - newgate)
    return hidden


if __name__ == "__main__":
    B, N, H = 2, 8, 32
    step = 2

    key = jax.random.PRNGKey(0)
    k_params, k_a, k_h = jax.random.split(key, 3)

    params = init_params(H, k_params)
    # Adjacency (soft, like SRGNN's normalized adjacency) and hidden embeddings.
    A = jax.random.uniform(k_a, (B, N, 2 * N), jnp.float32, 0.0, 1.0)
    hidden = jax.random.normal(k_h, (B, N, H), jnp.float32)

    fwd = jax.jit(functools.partial(gnn_forward, step=step))
    out = fwd(A, hidden, params)
    out = jax.block_until_ready(out)

    ref = gnn_reference(A, hidden, params, step=step)
    assert out.shape == (B, N, H)
    assert jnp.allclose(out, ref, atol=1e-4, rtol=1e-4), "mismatch vs reference"

    print("KERNEL_OK")
</pallas_src>

<mosaic_0001>
module attributes {stable_mosaic.version = 11 : i64} {
  func.func @_gnn_kernel(%arg0: i32, %arg1: memref<1x8x8xf32, #tpu.memory_space<vmem>>, %arg2: memref<1x8x8xf32, #tpu.memory_space<vmem>>, %arg3: memref<8x128xf32, #tpu.memory_space<vmem>>, %arg4: memref<128x640xf32, #tpu.memory_space<vmem>>, %arg5: memref<1x640xf32, #tpu.memory_space<vmem>>, %arg6: memref<128x384xf32, #tpu.memory_space<vmem>>, %arg7: memref<128x384xf32, #tpu.memory_space<vmem>>, %arg8: memref<1x384xf32, #tpu.memory_space<vmem>>, %arg9: memref<8x128xf32, #tpu.memory_space<vmem>>) attributes {dimension_semantics = [#tpu.dimension_semantics<parallel>], iteration_bounds = array<i64: 2>, scalar_prefetch = 0 : i64, scratch_operands = 0 : i64, tpu.core_type = #tpu.core_type<tc>, window_params = [{transform_indices = @transform_0, window_bounds = array<i64: 1, 8, 8>}, {transform_indices = @transform_1, window_bounds = array<i64: 1, 8, 8>}, {transform_indices = @transform_2, window_bounds = array<i64: 8, 128>}, {pipeline_mode = #tpu.pipeline_mode<synchronous>, transform_indices = @transform_3, window_bounds = array<i64: 128, 640>}, {pipeline_mode = #tpu.pipeline_mode<synchronous>, transform_indices = @transform_4, window_bounds = array<i64: 1, 640>}, {pipeline_mode = #tpu.pipeline_mode<synchronous>, transform_indices = @transform_5, window_bounds = array<i64: 128, 384>}, {pipeline_mode = #tpu.pipeline_mode<synchronous>, transform_indices = @transform_6, window_bounds = array<i64: 128, 384>}, {pipeline_mode = #tpu.pipeline_mode<synchronous>, transform_indices = @transform_7, window_bounds = array<i64: 1, 384>}, {transform_indices = @transform_8, window_bounds = array<i64: 8, 128>}]} {
    %c0 = arith.constant 0 : index
    %c0_0 = arith.constant 0 : index
    %0 = vector.load %arg4[%c0, %c0_0] : memref<128x640xf32, #tpu.memory_space<vmem>>, vector<128x640xf32>
    %c0_1 = arith.constant 0 : index
    %c0_2 = arith.constant 0 : index
    %1 = vector.load %arg6[%c0_1, %c0_2] : memref<128x384xf32, #tpu.memory_space<vmem>>, vector<128x384xf32>
    %c0_3 = arith.constant 0 : index
    %c0_4 = arith.constant 0 : index
    %2 = vector.load %arg7[%c0_3, %c0_4] : memref<128x384xf32, #tpu.memory_space<vmem>>, vector<128x384xf32>
    %c0_5 = arith.constant 0 : index
    %c0_6 = arith.constant 0 : index
    %3 = vector.load %arg5[%c0_5, %c0_6] : memref<1x640xf32, #tpu.memory_space<vmem>>, vector<1x640xf32>
    %4 = vector.shape_cast %3 : vector<1x640xf32> to vector<1x640xf32>
    %5 = vector.broadcast %4 : vector<1x640xf32> to vector<8x640xf32>
    %c0_7 = arith.constant 0 : index
    %c0_8 = arith.constant 0 : index
    %6 = vector.load %arg8[%c0_7, %c0_8] : memref<1x384xf32, #tpu.memory_space<vmem>>, vector<1x384xf32>
    %7 = vector.shape_cast %6 : vector<1x384xf32> to vector<1x384xf32>
    %8 = vector.broadcast %7 : vector<1x384xf32> to vector<8x384xf32>
    %c0_9 = arith.constant 0 : index
    %c0_10 = arith.constant 0 : index
    %c0_11 = arith.constant 0 : index
    %9 = vector.load %arg1[%c0_9, %c0_10, %c0_11] : memref<1x8x8xf32, #tpu.memory_space<vmem>>, vector<1x8x8xf32>
    %c0_12 = arith.constant 0 : index
    %c0_13 = arith.constant 0 : index
    %c0_14 = arith.constant 0 : index
    %10 = vector.load %arg2[%c0_12, %c0_13, %c0_14] : memref<1x8x8xf32, #tpu.memory_space<vmem>>, vector<1x8x8xf32>
    %c0_15 = arith.constant 0 : index
    %c0_16 = arith.constant 0 : index
    %11 = vector.load %arg3[%c0_15, %c0_16] : memref<8x128xf32, #tpu.memory_space<vmem>>, vector<8x128xf32>
    %c0_i32 = arith.constant 0 : i32
    %cst = arith.constant dense<0.000000e+00> : vector<8x640xf32>
    %12 = tpu.matmul %11, %0, %cst {dimension_numbers = #tpu.dot_dimension_numbers<[1], [0], [0], [1], [0, 0, 1, 1], [], []>} : vector<8x128xf32>, vector<128x640xf32>, vector<8x640xf32> -> vector<8x640xf32>
    %13 = arith.addf %12, %5 : vector<8x640xf32>
    %14 = vector.extract_strided_slice %13 {offsets = [0, 0], sizes = [8, 128], strides = [1, 1]} : vector<8x640xf32> to vector<8x128xf32>
    %15 = vector.shape_cast %14 : vector<8x128xf32> to vector<1x8x128xf32>
    %16 = vector.extract_strided_slice %13 {offsets = [0, 128], sizes = [8, 128], strides = [1, 1]} : vector<8x640xf32> to vector<8x128xf32>
    %17 = vector.shape_cast %16 : vector<8x128xf32> to vector<1x8x128xf32>
    %18 = vector.extract_strided_slice %13 {offsets = [0, 256], sizes = [8, 128], strides = [1, 1]} : vector<8x640xf32> to vector<8x128xf32>
    %19 = vector.extract_strided_slice %13 {offsets = [0, 384], sizes = [8, 128], strides = [1, 1]} : vector<8x640xf32> to vector<8x128xf32>
    %20 = vector.extract_strided_slice %13 {offsets = [0, 512], sizes = [8, 128], strides = [1, 1]} : vector<8x640xf32> to vector<8x128xf32>
    %21 = vector.extract_strided_slice %9 {offsets = [0, 0, 0], sizes = [1, 8, 1], strides = [1, 1, 1]} : vector<1x8x8xf32> to vector<1x8x1xf32>
    %22 = vector.extract_strided_slice %15 {offsets = [0, 0, 0], sizes = [1, 1, 128], strides = [1, 1, 1]} : vector<1x8x128xf32> to vector<1x1x128xf32>
    %23 = vector.broadcast %21 : vector<1x8x1xf32> to vector<1x8x128xf32>
    %24 = vector.broadcast %22 : vector<1x1x128xf32> to vector<1x8x128xf32>
    %25 = arith.mulf %23, %24 : vector<1x8x128xf32>
    %26 = vector.extract_strided_slice %9 {offsets = [0, 0, 1], sizes = [1, 8, 1], strides = [1, 1, 1]} : vector<1x8x8xf32> to vector<1x8x1xf32>
    %27 = vector.extract_strided_slice %15 {offsets = [0, 1, 0], sizes = [1, 1, 128], strides = [1, 1, 1]} : vector<1x8x128xf32> to vector<1x1x128xf32>
    %28 = vector.broadcast %26 : vector<1x8x1xf32> to vector<1x8x128xf32>
    %29 = vector.broadcast %27 : vector<1x1x128xf32> to vector<1x8x128xf32>
    %30 = arith.mulf %28, %29 : vector<1x8x128xf32>
    %31 = arith.addf %25, %30 : vector<1x8x128xf32>
    %32 = vector.extract_strided_slice %9 {offsets = [0, 0, 2], sizes = [1, 8, 1], strides = [1, 1, 1]} : vector<1x8x8xf32> to vector<1x8x1xf32>
    %33 = vector.extract_strided_slice %15 {offsets = [0, 2, 0], sizes = [1, 1, 128], strides = [1, 1, 1]} : vector<1x8x128xf32> to vector<1x1x128xf32>
    %34 = vector.broadcast %32 : vector<1x8x1xf32> to vector<1x8x128xf32>
    %35 = vector.broadcast %33 : vector<1x1x128xf32> to vector<1x8x128xf32>
    %36 = arith.mulf %34, %35 : vector<1x8x128xf32>
    %37 = arith.addf %31, %36 : vector<1x8x128xf32>
    %38 = vector.extract_strided_slice %9 {offsets = [0, 0, 3], sizes = [1, 8, 1], strides = [1, 1, 1]} : vector<1x8x8xf32> to vector<1x8x1xf32>
    %39 = vector.extract_strided_slice %15 {offsets = [0, 3, 0], sizes = [1, 1, 128], strides = [1, 1, 1]} : vector<1x8x128xf32> to vector<1x1x128xf32>
    %40 = vector.broadcast %38 : vector<1x8x1xf32> to vector<1x8x128xf32>
    %41 = vector.broadcast %39 : vector<1x1x128xf32> to vector<1x8x128xf32>
    %42 = arith.mulf %40, %41 : vector<1x8x128xf32>
    %43 = arith.addf %37, %42 : vector<1x8x128xf32>
    %44 = vector.extract_strided_slice %9 {offsets = [0, 0, 4], sizes = [1, 8, 1], strides = [1, 1, 1]} : vector<1x8x8xf32> to vector<1x8x1xf32>
    %45 = vector.extract_strided_slice %15 {offsets = [0, 4, 0], sizes = [1, 1, 128], strides = [1, 1, 1]} : vector<1x8x128xf32> to vector<1x1x128xf32>
    %46 = vector.broadcast %44 : vector<1x8x1xf32> to vector<1x8x128xf32>
    %47 = vector.broadcast %45 : vector<1x1x128xf32> to vector<1x8x128xf32>
    %48 = arith.mulf %46, %47 : vector<1x8x128xf32>
    %49 = arith.addf %43, %48 : vector<1x8x128xf32>
    %50 = vector.extract_strided_slice %9 {offsets = [0, 0, 5], sizes = [1, 8, 1], strides = [1, 1, 1]} : vector<1x8x8xf32> to vector<1x8x1xf32>
    %51 = vector.extract_strided_slice %15 {offsets = [0, 5, 0], sizes = [1, 1, 128], strides = [1, 1, 1]} : vector<1x8x128xf32> to vector<1x1x128xf32>
    %52 = vector.broadcast %50 : vector<1x8x1xf32> to vector<1x8x128xf32>
    %53 = vector.broadcast %51 : vector<1x1x128xf32> to vector<1x8x128xf32>
    %54 = arith.mulf %52, %53 : vector<1x8x128xf32>
    %55 = arith.addf %49, %54 : vector<1x8x128xf32>
    %56 = vector.extract_strided_slice %9 {offsets = [0, 0, 6], sizes = [1, 8, 1], strides = [1, 1, 1]} : vector<1x8x8xf32> to vector<1x8x1xf32>
    %57 = vector.extract_strided_slice %15 {offsets = [0, 6, 0], sizes = [1, 1, 128], strides = [1, 1, 1]} : vector<1x8x128xf32> to vector<1x1x128xf32>
    %58 = vector.broadcast %56 : vector<1x8x1xf32> to vector<1x8x128xf32>
    %59 = vector.broadcast %57 : vector<1x1x128xf32> to vector<1x8x128xf32>
    %60 = arith.mulf %58, %59 : vector<1x8x128xf32>
    %61 = arith.addf %55, %60 : vector<1x8x128xf32>
    %62 = vector.extract_strided_slice %9 {offsets = [0, 0, 7], sizes = [1, 8, 1], strides = [1, 1, 1]} : vector<1x8x8xf32> to vector<1x8x1xf32>
    %63 = vector.extract_strided_slice %15 {offsets = [0, 7, 0], sizes = [1, 1, 128], strides = [1, 1, 1]} : vector<1x8x128xf32> to vector<1x1x128xf32>
    %64 = vector.broadcast %62 : vector<1x8x1xf32> to vector<1x8x128xf32>
    %65 = vector.broadcast %63 : vector<1x1x128xf32> to vector<1x8x128xf32>
    %66 = arith.mulf %64, %65 : vector<1x8x128xf32>
    %67 = arith.addf %61, %66 : vector<1x8x128xf32>
    %68 = vector.shape_cast %67 : vector<1x8x128xf32> to vector<8x128xf32>
    %69 = vector.extract_strided_slice %10 {offsets = [0, 0, 0], sizes = [1, 8, 1], strides = [1, 1, 1]} : vector<1x8x8xf32> to vector<1x8x1xf32>
    %70 = vector.extract_strided_slice %17 {offsets = [0, 0, 0], sizes = [1, 1, 128], strides = [1, 1, 1]} : vector<1x8x128xf32> to vector<1x1x128xf32>
    %71 = vector.broadcast %69 : vector<1x8x1xf32> to vector<1x8x128xf32>
    %72 = vector.broadcast %70 : vector<1x1x128xf32> to vector<1x8x128xf32>
    %73 = arith.mulf %71, %72 : vector<1x8x128xf32>
    %74 = vector.extract_strided_slice %10 {offsets = [0, 0, 1], sizes = [1, 8, 1], strides = [1, 1, 1]} : vector<1x8x8xf32> to vector<1x8x1xf32>
    %75 = vector.extract_strided_slice %17 {offsets = [0, 1, 0], sizes = [1, 1, 128], strides = [1, 1, 1]} : vector<1x8x128xf32> to vector<1x1x128xf32>
    %76 = vector.broadcast %74 : vector<1x8x1xf32> to vector<1x8x128xf32>
    %77 = vector.broadcast %75 : vector<1x1x128xf32> to vector<1x8x128xf32>
    %78 = arith.mulf %76, %77 : vector<1x8x128xf32>
    %79 = arith.addf %73, %78 : vector<1x8x128xf32>
    %80 = vector.extract_strided_slice %10 {offsets = [0, 0, 2], sizes = [1, 8, 1], strides = [1, 1, 1]} : vector<1x8x8xf32> to vector<1x8x1xf32>
    %81 = vector.extract_strided_slice %17 {offsets = [0, 2, 0], sizes = [1, 1, 128], strides = [1, 1, 1]} : vector<1x8x128xf32> to vector<1x1x128xf32>
    %82 = vector.broadcast %80 : vector<1x8x1xf32> to vector<1x8x128xf32>
    %83 = vector.broadcast %81 : vector<1x1x128xf32> to vector<1x8x128xf32>
    %84 = arith.mulf %82, %83 : vector<1x8x128xf32>
    %85 = arith.addf %79, %84 : vector<1x8x128xf32>
    %86 = vector.extract_strided_slice %10 {offsets = [0, 0, 3], sizes = [1, 8, 1], strides = [1, 1, 1]} : vector<1x8x8xf32> to vector<1x8x1xf32>
    %87 = vector.extract_strided_slice %17 {offsets = [0, 3, 0], sizes = [1, 1, 128], strides = [1, 1, 1]} : vector<1x8x128xf32> to vector<1x1x128xf32>
    %88 = vector.broadcast %86 : vector<1x8x1xf32> to vector<1x8x128xf32>
    %89 = vector.broadcast %87 : vector<1x1x128xf32> to vector<1x8x128xf32>
    %90 = arith.mulf %88, %89 : vector<1x8x128xf32>
    %91 = arith.addf %85, %90 : vector<1x8x128xf32>
    %92 = vector.extract_strided_slice %10 {offsets = [0, 0, 4], sizes = [1, 8, 1], strides = [1, 1, 1]} : vector<1x8x8xf32> to vector<1x8x1xf32>
    %93 = vector.extract_strided_slice %17 {offsets = [0, 4, 0], sizes = [1, 1, 128], strides = [1, 1, 1]} : vector<1x8x128xf32> to vector<1x1x128xf32>
    %94 = vector.broadcast %92 : vector<1x8x1xf32> to vector<1x8x128xf32>
    %95 = vector.broadcast %93 : vector<1x1x128xf32> to vector<1x8x128xf32>
    %96 = arith.mulf %94, %95 : vector<1x8x128xf32>
    %97 = arith.addf %91, %96 : vector<1x8x128xf32>
    %98 = vector.extract_strided_slice %10 {offsets = [0, 0, 5], sizes = [1, 8, 1], strides = [1, 1, 1]} : vector<1x8x8xf32> to vector<1x8x1xf32>
    %99 = vector.extract_strided_slice %17 {offsets = [0, 5, 0], sizes = [1, 1, 128], strides = [1, 1, 1]} : vector<1x8x128xf32> to vector<1x1x128xf32>
    %100 = vector.broadcast %98 : vector<1x8x1xf32> to vector<1x8x128xf32>
    %101 = vector.broadcast %99 : vector<1x1x128xf32> to vector<1x8x128xf32>
    %102 = arith.mulf %100, %101 : vector<1x8x128xf32>
    %103 = arith.addf %97, %102 : vector<1x8x128xf32>
    %104 = vector.extract_strided_slice %10 {offsets = [0, 0, 6], sizes = [1, 8, 1], strides = [1, 1, 1]} : vector<1x8x8xf32> to vector<1x8x1xf32>
    %105 = vector.extract_strided_slice %17 {offsets = [0, 6, 0], sizes = [1, 1, 128], strides = [1, 1, 1]} : vector<1x8x128xf32> to vector<1x1x128xf32>
    %106 = vector.broadcast %104 : vector<1x8x1xf32> to vector<1x8x128xf32>
    %107 = vector.broadcast %105 : vector<1x1x128xf32> to vector<1x8x128xf32>
    %108 = arith.mulf %106, %107 : vector<1x8x128xf32>
    %109 = arith.addf %103, %108 : vector<1x8x128xf32>
    %110 = vector.extract_strided_slice %10 {offsets = [0, 0, 7], sizes = [1, 8, 1], strides = [1, 1, 1]} : vector<1x8x8xf32> to vector<1x8x1xf32>
    %111 = vector.extract_strided_slice %17 {offsets = [0, 7, 0], sizes = [1, 1, 128], strides = [1, 1, 1]} : vector<1x8x128xf32> to vector<1x1x128xf32>
    %112 = vector.broadcast %110 : vector<1x8x1xf32> to vector<1x8x128xf32>
    %113 = vector.broadcast %111 : vector<1x1x128xf32> to vector<1x8x128xf32>
    %114 = arith.mulf %112, %113 : vector<1x8x128xf32>
    %115 = arith.addf %109, %114 : vector<1x8x128xf32>
    %116 = vector.shape_cast %115 : vector<1x8x128xf32> to vector<8x128xf32>
    %cst_17 = arith.constant dense<0.000000e+00> : vector<8x384xf32>
    %117 = tpu.matmul %68, %1, %cst_17 {dimension_numbers = #tpu.dot_dimension_numbers<[1], [0], [0], [1], [0, 0, 1, 1], [], []>} : vector<8x128xf32>, vector<128x384xf32>, vector<8x384xf32> -> vector<8x384xf32>
    %cst_18 = arith.constant dense<0.000000e+00> : vector<8x384xf32>
    %118 = tpu.matmul %116, %2, %cst_18 {dimension_numbers = #tpu.dot_dimension_numbers<[1], [0], [0], [1], [0, 0, 1, 1], [], []>} : vector<8x128xf32>, vector<128x384xf32>, vector<8x384xf32> -> vector<8x384xf32>
    %119 = arith.addf %117, %118 : vector<8x384xf32>
    %120 = arith.addf %119, %8 : vector<8x384xf32>
    %121 = vector.extract_strided_slice %120 {offsets = [0, 0], sizes = [8, 128], strides = [1, 1]} : vector<8x384xf32> to vector<8x128xf32>
    %122 = vector.extract_strided_slice %120 {offsets = [0, 128], sizes = [8, 128], strides = [1, 1]} : vector<8x384xf32> to vector<8x128xf32>
    %123 = vector.extract_strided_slice %120 {offsets = [0, 256], sizes = [8, 128], strides = [1, 1]} : vector<8x384xf32> to vector<8x128xf32>
    %124 = arith.addf %121, %18 : vector<8x128xf32>
    %125 = arith.negf %124 : vector<8x128xf32>
    %126 = math.exp %125 : vector<8x128xf32>
    %cst_19 = arith.constant 1.000000e+00 : f32
    %127 = vector.broadcast %cst_19 : f32 to vector<8x128xf32>
    %128 = arith.addf %127, %126 : vector<8x128xf32>
    %129 = arith.divf %127, %128 : vector<8x128xf32>
    %130 = arith.addf %122, %19 : vector<8x128xf32>
    %131 = arith.negf %130 : vector<8x128xf32>
    %132 = math.exp %131 : vector<8x128xf32>
    %cst_20 = arith.constant 1.000000e+00 : f32
    %133 = vector.broadcast %cst_20 : f32 to vector<8x128xf32>
    %134 = arith.addf %133, %132 : vector<8x128xf32>
    %135 = arith.divf %133, %134 : vector<8x128xf32>
    %136 = arith.mulf %129, %20 : vector<8x128xf32>
    %137 = arith.addf %123, %136 : vector<8x128xf32>
    %138 = math.tanh %137 : vector<8x128xf32>
    %139 = arith.subf %11, %138 : vector<8x128xf32>
    %140 = arith.mulf %135, %139 : vector<8x128xf32>
    %141 = arith.addf %138, %140 : vector<8x128xf32>
    %c1_i32 = arith.constant 1 : i32
    %cst_21 = arith.constant dense<0.000000e+00> : vector<8x640xf32>
    %142 = tpu.matmul %141, %0, %cst_21 {dimension_numbers = #tpu.dot_dimension_numbers<[1], [0], [0], [1], [0, 0, 1, 1], [], []>} : vector<8x128xf32>, vector<128x640xf32>, vector<8x640xf32> -> vector<8x640xf32>
    %143 = arith.addf %142, %5 : vector<8x640xf32>
    %144 = vector.extract_strided_slice %143 {offsets = [0, 0], sizes = [8, 128], strides = [1, 1]} : vector<8x640xf32> to vector<8x128xf32>
    %145 = vector.shape_cast %144 : vector<8x128xf32> to vector<1x8x128xf32>
    %146 = vector.extract_strided_slice %143 {offsets = [0, 128], sizes = [8, 128], strides = [1, 1]} : vector<8x640xf32> to vector<8x128xf32>
    %147 = vector.shape_cast %146 : vector<8x128xf32> to vector<1x8x128xf32>
    %148 = vector.extract_strided_slice %143 {offsets = [0, 256], sizes = [8, 128], strides = [1, 1]} : vector<8x640xf32> to vector<8x128xf32>
    %149 = vector.extract_strided_slice %143 {offsets = [0, 384], sizes = [8, 128], strides = [1, 1]} : vector<8x640xf32> to vector<8x128xf32>
    %150 = vector.extract_strided_slice %143 {offsets = [0, 512], sizes = [8, 128], strides = [1, 1]} : vector<8x640xf32> to vector<8x128xf32>
    %151 = vector.extract_strided_slice %9 {offsets = [0, 0, 0], sizes = [1, 8, 1], strides = [1, 1, 1]} : vector<1x8x8xf32> to vector<1x8x1xf32>
    %152 = vector.extract_strided_slice %145 {offsets = [0, 0, 0], sizes = [1, 1, 128], strides = [1, 1, 1]} : vector<1x8x128xf32> to vector<1x1x128xf32>
    %153 = vector.broadcast %151 : vector<1x8x1xf32> to vector<1x8x128xf32>
    %154 = vector.broadcast %152 : vector<1x1x128xf32> to vector<1x8x128xf32>
    %155 = arith.mulf %153, %154 : vector<1x8x128xf32>
    %156 = vector.extract_strided_slice %9 {offsets = [0, 0, 1], sizes = [1, 8, 1], strides = [1, 1, 1]} : vector<1x8x8xf32> to vector<1x8x1xf32>
    %157 = vector.extract_strided_slice %145 {offsets = [0, 1, 0], sizes = [1, 1, 128], strides = [1, 1, 1]} : vector<1x8x128xf32> to vector<1x1x128xf32>
    %158 = vector.broadcast %156 : vector<1x8x1xf32> to vector<1x8x128xf32>
    %159 = vector.broadcast %157 : vector<1x1x128xf32> to vector<1x8x128xf32>
    %160 = arith.mulf %158, %159 : vector<1x8x128xf32>
    %161 = arith.addf %155, %160 : vector<1x8x128xf32>
    %162 = vector.extract_strided_slice %9 {offsets = [0, 0, 2], sizes = [1, 8, 1], strides = [1, 1, 1]} : vector<1x8x8xf32> to vector<1x8x1xf32>
    %163 = vector.extract_strided_slice %145 {offsets = [0, 2, 0], sizes = [1, 1, 128], strides = [1, 1, 1]} : vector<1x8x128xf32> to vector<1x1x128xf32>
    %164 = vector.broadcast %162 : vector<1x8x1xf32> to vector<1x8x128xf32>
    %165 = vector.broadcast %163 : vector<1x1x128xf32> to vector<1x8x128xf32>
    %166 = arith.mulf %164, %165 : vector<1x8x128xf32>
    %167 = arith.addf %161, %166 : vector<1x8x128xf32>
    %168 = vector.extract_strided_slice %9 {offsets = [0, 0, 3], sizes = [1, 8, 1], strides = [1, 1, 1]} : vector<1x8x8xf32> to vector<1x8x1xf32>
    %169 = vector.extract_strided_slice %145 {offsets = [0, 3, 0], sizes = [1, 1, 128], strides = [1, 1, 1]} : vector<1x8x128xf32> to vector<1x1x128xf32>
    %170 = vector.broadcast %168 : vector<1x8x1xf32> to vector<1x8x128xf32>
    %171 = vector.broadcast %169 : vector<1x1x128xf32> to vector<1x8x128xf32>
    %172 = arith.mulf %170, %171 : vector<1x8x128xf32>
    %173 = arith.addf %167, %172 : vector<1x8x128xf32>
    %174 = vector.extract_strided_slice %9 {offsets = [0, 0, 4], sizes = [1, 8, 1], strides = [1, 1, 1]} : vector<1x8x8xf32> to vector<1x8x1xf32>
    %175 = vector.extract_strided_slice %145 {offsets = [0, 4, 0], sizes = [1, 1, 128], strides = [1, 1, 1]} : vector<1x8x128xf32> to vector<1x1x128xf32>
    %176 = vector.broadcast %174 : vector<1x8x1xf32> to vector<1x8x128xf32>
    %177 = vector.broadcast %175 : vector<1x1x128xf32> to vector<1x8x128xf32>
    %178 = arith.mulf %176, %177 : vector<1x8x128xf32>
    %179 = arith.addf %173, %178 : vector<1x8x128xf32>
    %180 = vector.extract_strided_slice %9 {offsets = [0, 0, 5], sizes = [1, 8, 1], strides = [1, 1, 1]} : vector<1x8x8xf32> to vector<1x8x1xf32>
    %181 = vector.extract_strided_slice %145 {offsets = [0, 5, 0], sizes = [1, 1, 128], strides = [1, 1, 1]} : vector<1x8x128xf32> to vector<1x1x128xf32>
    %182 = vector.broadcast %180 : vector<1x8x1xf32> to vector<1x8x128xf32>
    %183 = vector.broadcast %181 : vector<1x1x128xf32> to vector<1x8x128xf32>
    %184 = arith.mulf %182, %183 : vector<1x8x128xf32>
    %185 = arith.addf %179, %184 : vector<1x8x128xf32>
    %186 = vector.extract_strided_slice %9 {offsets = [0, 0, 6], sizes = [1, 8, 1], strides = [1, 1, 1]} : vector<1x8x8xf32> to vector<1x8x1xf32>
    %187 = vector.extract_strided_slice %145 {offsets = [0, 6, 0], sizes = [1, 1, 128], strides = [1, 1, 1]} : vector<1x8x128xf32> to vector<1x1x128xf32>
    %188 = vector.broadcast %186 : vector<1x8x1xf32> to vector<1x8x128xf32>
    %189 = vector.broadcast %187 : vector<1x1x128xf32> to vector<1x8x128xf32>
    %190 = arith.mulf %188, %189 : vector<1x8x128xf32>
    %191 = arith.addf %185, %190 : vector<1x8x128xf32>
    %192 = vector.extract_strided_slice %9 {offsets = [0, 0, 7], sizes = [1, 8, 1], strides = [1, 1, 1]} : vector<1x8x8xf32> to vector<1x8x1xf32>
    %193 = vector.extract_strided_slice %145 {offsets = [0, 7, 0], sizes = [1, 1, 128], strides = [1, 1, 1]} : vector<1x8x128xf32> to vector<1x1x128xf32>
    %194 = vector.broadcast %192 : vector<1x8x1xf32> to vector<1x8x128xf32>
    %195 = vector.broadcast %193 : vector<1x1x128xf32> to vector<1x8x128xf32>
    %196 = arith.mulf %194, %195 : vector<1x8x128xf32>
    %197 = arith.addf %191, %196 : vector<1x8x128xf32>
    %198 = vector.shape_cast %197 : vector<1x8x128xf32> to vector<8x128xf32>
    %199 = vector.extract_strided_slice %10 {offsets = [0, 0, 0], sizes = [1, 8, 1], strides = [1, 1, 1]} : vector<1x8x8xf32> to vector<1x8x1xf32>
    %200 = vector.extract_strided_slice %147 {offsets = [0, 0, 0], sizes = [1, 1, 128], strides = [1, 1, 1]} : vector<1x8x128xf32> to vector<1x1x128xf32>
    %201 = vector.broadcast %199 : vector<1x8x1xf32> to vector<1x8x128xf32>
    %202 = vector.broadcast %200 : vector<1x1x128xf32> to vector<1x8x128xf32>
    %203 = arith.mulf %201, %202 : vector<1x8x128xf32>
    %204 = vector.extract_strided_slice %10 {offsets = [0, 0, 1], sizes = [1, 8, 1], strides = [1, 1, 1]} : vector<1x8x8xf32> to vector<1x8x1xf32>
    %205 = vector.extract_strided_slice %147 {offsets = [0, 1, 0], sizes = [1, 1, 128], strides = [1, 1, 1]} : vector<1x8x128xf32> to vector<1x1x128xf32>
    %206 = vector.broadcast %204 : vector<1x8x1xf32> to vector<1x8x128xf32>
    %207 = vector.broadcast %205 : vector<1x1x128xf32> to vector<1x8x128xf32>
    %208 = arith.mulf %206, %207 : vector<1x8x128xf32>
    %209 = arith.addf %203, %208 : vector<1x8x128xf32>
    %210 = vector.extract_strided_slice %10 {offsets = [0, 0, 2], sizes = [1, 8, 1], strides = [1, 1, 1]} : vector<1x8x8xf32> to vector<1x8x1xf32>
    %211 = vector.extract_strided_slice %147 {offsets = [0, 2, 0], sizes = [1, 1, 128], strides = [1, 1, 1]} : vector<1x8x128xf32> to vector<1x1x128xf32>
    %212 = vector.broadcast %210 : vector<1x8x1xf32> to vector<1x8x128xf32>
    %213 = vector.broadcast %211 : vector<1x1x128xf32> to vector<1x8x128xf32>
    %214 = arith.mulf %212, %213 : vector<1x8x128xf32>
    %215 = arith.addf %209, %214 : vector<1x8x128xf32>
    %216 = vector.extract_strided_slice %10 {offsets = [0, 0, 3], sizes = [1, 8, 1], strides = [1, 1, 1]} : vector<1x8x8xf32> to vector<1x8x1xf32>
    %217 = vector.extract_strided_slice %147 {offsets = [0, 3, 0], sizes = [1, 1, 128], strides = [1, 1, 1]} : vector<1x8x128xf32> to vector<1x1x128xf32>
    %218 = vector.broadcast %216 : vector<1x8x1xf32> to vector<1x8x128xf32>
    %219 = vector.broadcast %217 : vector<1x1x128xf32> to vector<1x8x128xf32>
    %220 = arith.mulf %218, %219 : vector<1x8x128xf32>
    %221 = arith.addf %215, %220 : vector<1x8x128xf32>
    %222 = vector.extract_strided_slice %10 {offsets = [0, 0, 4], sizes = [1, 8, 1], strides = [1, 1, 1]} : vector<1x8x8xf32> to vector<1x8x1xf32>
    %223 = vector.extract_strided_slice %147 {offsets = [0, 4, 0], sizes = [1, 1, 128], strides = [1, 1, 1]} : vector<1x8x128xf32> to vector<1x1x128xf32>
    %224 = vector.broadcast %222 : vector<1x8x1xf32> to vector<1x8x128xf32>
    %225 = vector.broadcast %223 : vector<1x1x128xf32> to vector<1x8x128xf32>
    %226 = arith.mulf %224, %225 : vector<1x8x128xf32>
    %227 = arith.addf %221, %226 : vector<1x8x128xf32>
    %228 = vector.extract_strided_slice %10 {offsets = [0, 0, 5], sizes = [1, 8, 1], strides = [1, 1, 1]} : vector<1x8x8xf32> to vector<1x8x1xf32>
    %229 = vector.extract_strided_slice %147 {offsets = [0, 5, 0], sizes = [1, 1, 128], strides = [1, 1, 1]} : vector<1x8x128xf32> to vector<1x1x128xf32>
    %230 = vector.broadcast %228 : vector<1x8x1xf32> to vector<1x8x128xf32>
    %231 = vector.broadcast %229 : vector<1x1x128xf32> to vector<1x8x128xf32>
    %232 = arith.mulf %230, %231 : vector<1x8x128xf32>
    %233 = arith.addf %227, %232 : vector<1x8x128xf32>
    %234 = vector.extract_strided_slice %10 {offsets = [0, 0, 6], sizes = [1, 8, 1], strides = [1, 1, 1]} : vector<1x8x8xf32> to vector<1x8x1xf32>
    %235 = vector.extract_strided_slice %147 {offsets = [0, 6, 0], sizes = [1, 1, 128], strides = [1, 1, 1]} : vector<1x8x128xf32> to vector<1x1x128xf32>
    %236 = vector.broadcast %234 : vector<1x8x1xf32> to vector<1x8x128xf32>
    %237 = vector.broadcast %235 : vector<1x1x128xf32> to vector<1x8x128xf32>
    %238 = arith.mulf %236, %237 : vector<1x8x128xf32>
    %239 = arith.addf %233, %238 : vector<1x8x128xf32>
    %240 = vector.extract_strided_slice %10 {offsets = [0, 0, 7], sizes = [1, 8, 1], strides = [1, 1, 1]} : vector<1x8x8xf32> to vector<1x8x1xf32>
    %241 = vector.extract_strided_slice %147 {offsets = [0, 7, 0], sizes = [1, 1, 128], strides = [1, 1, 1]} : vector<1x8x128xf32> to vector<1x1x128xf32>
    %242 = vector.broadcast %240 : vector<1x8x1xf32> to vector<1x8x128xf32>
    %243 = vector.broadcast %241 : vector<1x1x128xf32> to vector<1x8x128xf32>
    %244 = arith.mulf %242, %243 : vector<1x8x128xf32>
    %245 = arith.addf %239, %244 : vector<1x8x128xf32>
    %246 = vector.shape_cast %245 : vector<1x8x128xf32> to vector<8x128xf32>
    %cst_22 = arith.constant dense<0.000000e+00> : vector<8x384xf32>
    %247 = tpu.matmul %198, %1, %cst_22 {dimension_numbers = #tpu.dot_dimension_numbers<[1], [0], [0], [1], [0, 0, 1, 1], [], []>} : vector<8x128xf32>, vector<128x384xf32>, vector<8x384xf32> -> vector<8x384xf32>
    %cst_23 = arith.constant dense<0.000000e+00> : vector<8x384xf32>
    %248 = tpu.matmul %246, %2, %cst_23 {dimension_numbers = #tpu.dot_dimension_numbers<[1], [0], [0], [1], [0, 0, 1, 1], [], []>} : vector<8x128xf32>, vector<128x384xf32>, vector<8x384xf32> -> vector<8x384xf32>
    %249 = arith.addf %247, %248 : vector<8x384xf32>
    %250 = arith.addf %249, %8 : vector<8x384xf32>
    %251 = vector.extract_strided_slice %250 {offsets = [0, 0], sizes = [8, 128], strides = [1, 1]} : vector<8x384xf32> to vector<8x128xf32>
    %252 = vector.extract_strided_slice %250 {offsets = [0, 128], sizes = [8, 128], strides = [1, 1]} : vector<8x384xf32> to vector<8x128xf32>
    %253 = vector.extract_strided_slice %250 {offsets = [0, 256], sizes = [8, 128], strides = [1, 1]} : vector<8x384xf32> to vector<8x128xf32>
    %254 = arith.addf %251, %148 : vector<8x128xf32>
    %255 = arith.negf %254 : vector<8x128xf32>
    %256 = math.exp %255 : vector<8x128xf32>
    %cst_24 = arith.constant 1.000000e+00 : f32
    %257 = vector.broadcast %cst_24 : f32 to vector<8x128xf32>
    %258 = arith.addf %257, %256 : vector<8x128xf32>
    %259 = arith.divf %257, %258 : vector<8x128xf32>
    %260 = arith.addf %252, %149 : vector<8x128xf32>
    %261 = arith.negf %260 : vector<8x128xf32>
    %262 = math.exp %261 : vector<8x128xf32>
    %cst_25 = arith.constant 1.000000e+00 : f32
    %263 = vector.broadcast %cst_25 : f32 to vector<8x128xf32>
    %264 = arith.addf %263, %262 : vector<8x128xf32>
    %265 = arith.divf %263, %264 : vector<8x128xf32>
    %266 = arith.mulf %259, %150 : vector<8x128xf32>
    %267 = arith.addf %253, %266 : vector<8x128xf32>
    %268 = math.tanh %267 : vector<8x128xf32>
    %269 = arith.subf %141, %268 : vector<8x128xf32>
    %270 = arith.mulf %265, %269 : vector<8x128xf32>
    %271 = arith.addf %268, %270 : vector<8x128xf32>
    %c0_26 = arith.constant 0 : index
    %c0_27 = arith.constant 0 : index
    %272 = vector.load %arg9[%c0_26, %c0_27] : memref<8x128xf32, #tpu.memory_space<vmem>>, vector<8x128xf32>
    tpu.vector_store %arg9[%c0_26, %c0_27], %271 {strides = array<i32>} : memref<8x128xf32, #tpu.memory_space<vmem>>, vector<8x128xf32>,
    return
  }
  func.func @transform_0(%arg0: i32) -> (i32, i32, i32) {
    %c0_i32 = arith.constant 0 : i32
    %c0_i32_0 = arith.constant 0 : i32
    %c0_i32_1 = arith.constant 0 : i32
    return %arg0, %c0_i32, %c0_i32_0 : i32, i32, i32
  }
  func.func @transform_1(%arg0: i32) -> (i32, i32, i32) {
    %c0_i32 = arith.constant 0 : i32
    %c0_i32_0 = arith.constant 0 : i32
    %c0_i32_1 = arith.constant 0 : i32
    return %arg0, %c0_i32, %c0_i32_0 : i32, i32, i32
  }
  func.func @transform_2(%arg0: i32) -> (i32, i32) {
    %c0_i32 = arith.constant 0 : i32
    %c0_i32_0 = arith.constant 0 : i32
    return %arg0, %c0_i32 : i32, i32
  }
  func.func @transform_3(%arg0: i32) -> (i32, i32) {
    %c0_i32 = arith.constant 0 : i32
    %c0_i32_0 = arith.constant 0 : i32
    %c0_i32_1 = arith.constant 0 : i32
    return %c0_i32, %c0_i32_0 : i32, i32
  }
  func.func @transform_4(%arg0: i32) -> (i32, i32) {
    %c0_i32 = arith.constant 0 : i32
    %c0_i32_0 = arith.constant 0 : i32
    %c0_i32_1 = arith.constant 0 : i32
    return %c0_i32, %c0_i32_0 : i32, i32
  }
  func.func @transform_5(%arg0: i32) -> (i32, i32) {
    %c0_i32 = arith.constant 0 : i32
    %c0_i32_0 = arith.constant 0 : i32
    %c0_i32_1 = arith.constant 0 : i32
    return %c0_i32, %c0_i32_0 : i32, i32
  }
  func.func @transform_6(%arg0: i32) -> (i32, i32) {
    %c0_i32 = arith.constant 0 : i32
    %c0_i32_0 = arith.constant 0 : i32
    %c0_i32_1 = arith.constant 0 : i32
    return %c0_i32, %c0_i32_0 : i32, i32
  }
  func.func @transform_7(%arg0: i32) -> (i32, i32) {
    %c0_i32 = arith.constant 0 : i32
    %c0_i32_0 = arith.constant 0 : i32
    %c0_i32_1 = arith.constant 0 : i32
    return %c0_i32, %c0_i32_0 : i32, i32
  }
  func.func @transform_8(%arg0: i32) -> (i32, i32) {
    %c0_i32 = arith.constant 0 : i32
    %c0_i32_0 = arith.constant 0 : i32
    return %arg0, %c0_i32 : i32, i32
  }
}

</mosaic_0001>

<llo_original>
// kernel: custom-call
$region0: #{custom-call}
  %s0 = inlined_call_operand.vmem [shape: f32[640], index: 0, kind: output, shape index: {}]

// kernel: gnn_forward.1
$region0: #{gnn_forward.1}
  #allocation0 [shape = 'u32[]', space=smem, size = 0x4, offset = 0x4, fixed_abs, tag = 'smem constant byte address 0x4 - core index']
  #allocation1 [shape = 'u32[72,128]{1,0:T(1,128)}', space=vmem, size = 0x9000, scoped, tag = 'internal scratch']
  %s0 = inlined_call_operand.vmem [shape: f32[2,8,8], index: 0, kind: input, shape index: {}]
  %s1 = inlined_call_operand.vmem [shape: f32[2,8,8], index: 1, kind: input, shape index: {}]
  %s2 = inlined_call_operand.vmem [shape: f32[16,128], index: 2, kind: input, shape index: {}, may-alias: {2,8}]
  %s3 = inlined_call_operand.vmem [shape: f32[128,640], index: 3, kind: input, shape index: {}]
  %s4 = inlined_call_operand.vmem [shape: f32[1,640], index: 4, kind: input, shape index: {}]
  %s5 = inlined_call_operand.vmem [shape: f32[128,384], index: 5, kind: input, shape index: {}]
  %s6 = inlined_call_operand.vmem [shape: f32[128,384], index: 6, kind: input, shape index: {}]
  %s7 = inlined_call_operand.vmem [shape: f32[1,384], index: 7, kind: input, shape index: {}]
  %s8 = inlined_call_operand.vmem [shape: f32[16,128], index: 8, kind: output, shape index: {}, may-alias: {2,8}]
  %s9 = sld [smem:[#allocation0]]
  $region65: #{gnn_forward.1} parent=0
    _
  %s11 = ssub.s32 1, %s9
  %s12 = scalar_select 0, %s11, %s9
  loop: start=0, step=1, limit=4
  $region2: #{gnn_forward.1} parent=0 // loop_pre_header
    _
  $region3: #{gnn_forward.1} parent=0 // loop_header
    %s14 = sphi 0, %s18
    %p15 = scmp.ge.s32.totalorder %s14, 4
    %s24 = sphi 0, %s26
    %s27 = sphi 0, %s24
    %s28 = sphi 0, %s27
    %s44 = sphi 0, %s28
    %s50 = sphi 0, %s52
    %s53 = sphi 0, %s50
    %s54 = sphi 0, %s53
    %s70 = sphi 0, %s54
    %s76 = sphi 0, %s78
    %s79 = sphi 0, %s76
    %s80 = sphi 0, %s79
    %s96 = sphi 0, %s80
    %s100 = sphi 0, %s100
    %s102 = sphi 0, %s100
    %s103 = sphi 0, %s102
    %s117 = sphi 0, %s103
    %s121 = sphi 0, %s121
    %s123 = sphi 0, %s121
    %s124 = sphi 0, %s123
    %s138 = sphi 0, %s124
    %s142 = sphi 0, %s142
    %s144 = sphi 0, %s142
    %s145 = sphi 0, %s144
    %s159 = sphi 0, %s145
    %s163 = sphi 0, %s163
    %s165 = sphi 0, %s163
    %s166 = sphi 0, %s165
    %s180 = sphi 0, %s166
    %s184 = sphi 0, %s184
    %s186 = sphi 0, %s184
    %s187 = sphi 0, %s186
    %s201 = sphi 0, %s187
    %s207 = sphi 0, %s209
    %s210 = sphi 0, %s207
    %s211 = sphi 0, %s210
    %s227 = sphi 0, %s211
  $region4: #{gnn_forward.1} parent=0 // loop_header_branch
    %17 = sbr.rel (%p15) target = $region8
  $region5: #{gnn_forward.1} parent=0 // loop_body
    %s19 = ssub.s32 %s14, 1
    %s20 = ssub.s32 %s14, 2
    %s21 = sadd.s32 %s14, 1
    %s22 = ssub.s32 %s14, %s21
    %p23 = scmp.eq.s32.totalorder %s22, 0
    %s25 = sadd.s32 %s24, 1
    %s26 = scalar_select %p23, %s24, %s25
    %p29 = pneg %p23
    %p30 = scmp.eq.s32.totalorder %s14, 1
    %p31 = por %p29, %p30
    %p32 = scmp.ne.s32.totalorder %s24, %s27
    %p33 = scmp.eq.s32.totalorder %s14, 0
    %p34 = por %p32, %p33
    %p35 = scmp.ne.s32.totalorder %s24, %s27
    %p36 = scmp.eq.s32.totalorder %s19, 1
    %p37 = por %p35, %p36
    %p38 = scmp.ne.s32.totalorder %s27, %s28
    %p39 = scmp.eq.s32.totalorder %s19, 0
    %p40 = por %p38, %p39
    %p41 = scmp.ne.s32.totalorder %s27, %s28
    %p42 = scmp.eq.s32.totalorder %s20, 1
    %p43 = por %p41, %p42
    %p45 = scmp.ne.s32.totalorder %s28, %s44
    %p46 = scmp.eq.s32.totalorder %s20, 0
    %p47 = por %p45, %p46
    %s48 = ssub.s32 %s14, %s21
    %p49 = scmp.eq.s32.totalorder %s48, 0
    %s51 = sadd.s32 %s50, 1
    %s52 = scalar_select %p49, %s50, %s51
    %p55 = pneg %p49
    %p56 = scmp.eq.s32.totalorder %s14, 1
    %p57 = por %p55, %p56
    %p58 = scmp.ne.s32.totalorder %s50, %s53
    %p59 = scmp.eq.s32.totalorder %s14, 0
    %p60 = por %p58, %p59
    %p61 = scmp.ne.s32.totalorder %s50, %s53
    %p62 = scmp.eq.s32.totalorder %s19, 1
    %p63 = por %p61, %p62
    %p64 = scmp.ne.s32.totalorder %s53, %s54
    %p65 = scmp.eq.s32.totalorder %s19, 0
    %p66 = por %p64, %p65
    %p67 = scmp.ne.s32.totalorder %s53, %s54
    %p68 = scmp.eq.s32.totalorder %s20, 1
    %p69 = por %p67, %p68
    %p71 = scmp.ne.s32.totalorder %s54, %s70
    %p72 = scmp.eq.s32.totalorder %s20, 0
    %p73 = por %p71, %p72
    %s74 = ssub.s32 %s14, %s21
    %p75 = scmp.eq.s32.totalorder %s74, 0
    %s77 = sadd.s32 %s76, 1
    %s78 = scalar_select %p75, %s76, %s77
    %p81 = pneg %p75
    %p82 = scmp.eq.s32.totalorder %s14, 1
    %p83 = por %p81, %p82
    %p84 = scmp.ne.s32.totalorder %s76, %s79
    %p85 = scmp.eq.s32.totalorder %s14, 0
    %p86 = por %p84, %p85
    %p87 = scmp.ne.s32.totalorder %s76, %s79
    %p88 = scmp.eq.s32.totalorder %s19, 1
    %p89 = por %p87, %p88
    %p90 = scmp.ne.s32.totalorder %s79, %s80
    %p91 = scmp.eq.s32.totalorder %s19, 0
    %p92 = por %p90, %p91
    %p93 = scmp.ne.s32.totalorder %s79, %s80
    %p94 = scmp.eq.s32.totalorder %s20, 1
    %p95 = por %p93, %p94
    %p97 = scmp.ne.s32.totalorder %s80, %s96
    %p98 = scmp.eq.s32.totalorder %s20, 0
    %p99 = por %p97, %p98
    %s101 = sadd.s32 %s100, 1
    %p104 = scmp.eq.s32.totalorder %s14, 1
    %p105 = scmp.ne.s32.totalorder %s100, %s102
    %p106 = scmp.eq.s32.totalorder %s14, 0
    %p107 = por %p105, %p106
    %p108 = scmp.ne.s32.totalorder %s100, %s102
    %p109 = scmp.eq.s32.totalorder %s19, 1
    %p110 = por %p108, %p109
    %p111 = scmp.ne.s32.totalorder %s102, %s103
    %p112 = scmp.eq.s32.totalorder %s19, 0
    %p113 = por %p111, %p112
    %p114 = scmp.ne.s32.totalorder %s102, %s103
    %p115 = scmp.eq.s32.totalorder %s20, 1
    %p116 = por %p114, %p115
    %p118 = scmp.ne.s32.totalorder %s103, %s117
    %p119 = scmp.eq.s32.totalorder %s20, 0
    %p120 = por %p118, %p119
    %s122 = sadd.s32 %s121, 1
    %p125 = scmp.eq.s32.totalorder %s14, 1
    %p126 = scmp.ne.s32.totalorder %s121, %s123
    %p127 = scmp.eq.s32.totalorder %s14, 0
    %p128 = por %p126, %p127
    %p129 = scmp.ne.s32.totalorder %s121, %s123
    %p130 = scmp.eq.s32.totalorder %s19, 1
    %p131 = por %p129, %p130
    %p132 = scmp.ne.s32.totalorder %s123, %s124
    %p133 = scmp.eq.s32.totalorder %s19, 0
    %p134 = por %p132, %p133
    %p135 = scmp.ne.s32.totalorder %s123, %s124
    %p136 = scmp.eq.s32.totalorder %s20, 1
    %p137 = por %p135, %p136
    %p139 = scmp.ne.s32.totalorder %s124, %s138
    %p140 = scmp.eq.s32.totalorder %s20, 0
    %p141 = por %p139, %p140
    %s143 = sadd.s32 %s142, 1
    %p146 = scmp.eq.s32.totalorder %s14, 1
    %p147 = scmp.ne.s32.totalorder %s142, %s144
    %p148 = scmp.eq.s32.totalorder %s14, 0
    %p149 = por %p147, %p148
    %p150 = scmp.ne.s32.totalorder %s142, %s144
    %p151 = scmp.eq.s32.totalorder %s19, 1
    %p152 = por %p150, %p151
    %p153 = scmp.ne.s32.totalorder %s144, %s145
    %p154 = scmp.eq.s32.totalorder %s19, 0
    %p155 = por %p153, %p154
    %p156 = scmp.ne.s32.totalorder %s144, %s145
    %p157 = scmp.eq.s32.totalorder %s20, 1
    %p158 = por %p156, %p157
    %p160 = scmp.ne.s32.totalorder %s145, %s159
    %p161 = scmp.eq.s32.totalorder %s20, 0
    %p162 = por %p160, %p161
    %s164 = sadd.s32 %s163, 1
    %p167 = scmp.eq.s32.totalorder %s14, 1
    %p168 = scmp.ne.s32.totalorder %s163, %s165
    %p169 = scmp.eq.s32.totalorder %s14, 0
    %p170 = por %p168, %p169
    %p171 = scmp.ne.s32.totalorder %s163, %s165
    %p172 = scmp.eq.s32.totalorder %s19, 1
    %p173 = por %p171, %p172
    %p174 = scmp.ne.s32.totalorder %s165, %s166
    %p175 = scmp.eq.s32.totalorder %s19, 0
    %p176 = por %p174, %p175
    %p177 = scmp.ne.s32.totalorder %s165, %s166
    %p178 = scmp.eq.s32.totalorder %s20, 1
    %p179 = por %p177, %p178
    %p181 = scmp.ne.s32.totalorder %s166, %s180
    %p182 = scmp.eq.s32.totalorder %s20, 0
    %p183 = por %p181, %p182
    %s185 = sadd.s32 %s184, 1
    %p188 = scmp.eq.s32.totalorder %s14, 1
    %p189 = scmp.ne.s32.totalorder %s184, %s186
    %p190 = scmp.eq.s32.totalorder %s14, 0
    %p191 = por %p189, %p190
    %p192 = scmp.ne.s32.totalorder %s184, %s186
    %p193 = scmp.eq.s32.totalorder %s19, 1
    %p194 = por %p192, %p193
    %p195 = scmp.ne.s32.totalorder %s186, %s187
    %p196 = scmp.eq.s32.totalorder %s19, 0
    %p197 = por %p195, %p196
    %p198 = scmp.ne.s32.totalorder %s186, %s187
    %p199 = scmp.eq.s32.totalorder %s20, 1
    %p200 = por %p198, %p199
    %p202 = scmp.ne.s32.totalorder %s187, %s201
    %p203 = scmp.eq.s32.totalorder %s20, 0
    %p204 = por %p202, %p203
    %s205 = ssub.s32 %s14, %s21
    %p206 = scmp.eq.s32.totalorder %s205, 0
    %s208 = sadd.s32 %s207, 1
    %s209 = scalar_select %p206, %s207, %s208
    %p212 = pneg %p206
    %p213 = scmp.eq.s32.totalorder %s14, 1
    %p214 = por %p212, %p213
    %p215 = scmp.ne.s32.totalorder %s207, %s210
    %p216 = scmp.eq.s32.totalorder %s14, 0
    %p217 = por %p215, %p216
    %p218 = scmp.ne.s32.totalorder %s207, %s210
    %p219 = scmp.eq.s32.totalorder %s19, 1
    %p220 = por %p218, %p219
    %p221 = scmp.ne.s32.totalorder %s210, %s211
    %p222 = scmp.eq.s32.totalorder %s19, 0
    %p223 = por %p221, %p222
    %p224 = scmp.ne.s32.totalorder %s210, %s211
    %p225 = scmp.eq.s32.totalorder %s20, 1
    %p226 = por %p224, %p225
    %p228 = scmp.ne.s32.totalorder %s211, %s227
    %p229 = scmp.eq.s32.totalorder %s20, 0
    %p230 = por %p228, %p229
    %p231 = scmp.le.s32.totalorder 1, %s14
    %p232 = scmp.lt.s32.totalorder %s14, 3
    %p233 = pnand %p231, %p232
    %p234 = pneg %p233
    // Predicated region
    $region9: #{gnn_forward.1} parent=5 // pred_check
      _
    $region10: #{gnn_forward.1} parent=5 // pred_check_branch
      %236 = sbr.rel (%p233) target = $region12
    $region11: #{gnn_forward.1} parent=5 // pred_region
      %s237 = ssub.s32 %s14, 1
      // Predicated region
      $region13: #{gnn_forward.1} parent=11 // pred_check
        %p238 = pneg %p113
      $region14: #{gnn_forward.1} parent=11 // pred_check_branch
        %240 = sbr.rel (%p238) target = $region16
      $region15: #{gnn_forward.1} parent=11 // pred_region
        _
      $region16: #{gnn_forward.1} parent=11 // pred_fallthru
        _
      // Predicated region
      $region17: #{gnn_forward.1} parent=11 // pred_check
        %p241 = pneg %p134
      $region18: #{gnn_forward.1} parent=11 // pred_check_branch
        %243 = sbr.rel (%p241) target = $region20
      $region19: #{gnn_forward.1} parent=11 // pred_region
        _
      $region20: #{gnn_forward.1} parent=11 // pred_fallthru
        _
      // Predicated region
      $region21: #{gnn_forward.1} parent=11 // pred_check
        %p244 = pneg %p155
      $region22: #{gnn_forward.1} parent=11 // pred_check_branch
        %246 = sbr.rel (%p244) target = $region24
      $region23: #{gnn_forward.1} parent=11 // pred_region
        _
      $region24: #{gnn_forward.1} parent=11 // pred_fallthru
        _
      // Predicated region
      $region25: #{gnn_forward.1} parent=11 // pred_check
        %p247 = pneg %p176
      $region26: #{gnn_forward.1} parent=11 // pred_check_branch
        %249 = sbr.rel (%p247) target = $region28
      $region27: #{gnn_forward.1} parent=11 // pred_region
        _
      $region28: #{gnn_forward.1} parent=11 // pred_fallthru
        _
      // Predicated region
      $region29: #{gnn_forward.1} parent=11 // pred_check
        %p250 = pneg %p197
      $region30: #{gnn_forward.1} parent=11 // pred_check_branch
        %252 = sbr.rel (%p250) target = $region32
      $region31: #{gnn_forward.1} parent=11 // pred_region
        _
      $region32: #{gnn_forward.1} parent=11 // pred_fallthru
        _
    $region12: #{gnn_forward.1} parent=5 // pred_fallthru
      _
    %p253 = scmp.lt.s32.totalorder %s14, 2
    // Predicated region
    $region33: #{gnn_forward.1} parent=5 // pred_check
      %p254 = pneg %p253
    $region34: #{gnn_forward.1} parent=5 // pred_check_branch
      %256 = sbr.rel (%p254) target = $region36
    $region35: #{gnn_forward.1} parent=5 // pred_region
      // Predicated region
      $region37: #{gnn_forward.1} parent=35 // pred_check
        %p257 = pneg %p34
      $region38: #{gnn_forward.1} parent=35 // pred_check_branch
        %259 = sbr.rel (%p257) target = $region40
      $region39: #{gnn_forward.1} parent=35 // pred_region
        %p260 = scmp.lt.s32.totalorder %s14, 1
        %s261 = scalar_select %p260, %s14, 1
        %s262 = smul.addr %s261, 8
        %s263 = scalar_lea.vmem %s0, %s262
      $region40: #{gnn_forward.1} parent=35 // pred_fallthru
        _
      // Predicated region
      $region41: #{gnn_forward.1} parent=35 // pred_check
        %p264 = pneg %p60
      $region42: #{gnn_forward.1} parent=35 // pred_check_branch
        %266 = sbr.rel (%p264) target = $region44
      $region43: #{gnn_forward.1} parent=35 // pred_region
        %p267 = scmp.lt.s32.totalorder %s14, 1
        %s268 = scalar_select %p267, %s14, 1
        %s269 = smul.addr %s268, 8
        %s270 = scalar_lea.vmem %s1, %s269
      $region44: #{gnn_forward.1} parent=35 // pred_fallthru
        _
      // Predicated region
      $region45: #{gnn_forward.1} parent=35 // pred_check
        %p271 = pneg %p86
      $region46: #{gnn_forward.1} parent=35 // pred_check_branch
        %273 = sbr.rel (%p271) target = $region48
      $region47: #{gnn_forward.1} parent=35 // pred_region
        %p274 = scmp.lt.s32.totalorder %s14, 1
        %s275 = scalar_select %p274, %s14, 1
        %s276 = smul.addr %s275, 8
        %s277 = scalar_lea.vmem %s2, %s276
      $region48: #{gnn_forward.1} parent=35 // pred_fallthru
        _
    $region36: #{gnn_forward.1} parent=5 // pred_fallthru
      _
    %p278 = scmp.le.s32.totalorder 1, %s14
    %p279 = scmp.lt.s32.totalorder %s14, 3
    %p280 = pnand %p278, %p279
    %p281 = pneg %p280
    // Predicated region
    $region49: #{gnn_forward.1} parent=5 // pred_check
      _
    $region50: #{gnn_forward.1} parent=5 // pred_check_branch
      %283 = sbr.rel (%p280) target = $region52
    $region51: #{gnn_forward.1} parent=5 // pred_region
      %s284 = ssub.s32 %s14, 1
      %p285 = scmp.lt.s32.totalorder %s19, 1
      %s286 = scalar_select %p285, %s19, 1
      %s287 = smul.addr %s286, 8
      %s288 = scalar_lea.vmem %s0, %s287
      %p289 = pneg %p40
      %p290 = pneg %p37
      %p291 = scmp.lt.s32.totalorder %s19, 1
      %s292 = scalar_select %p291, %s19, 1
      %s293 = smul.addr %s292, 8
      %s294 = scalar_lea.vmem %s1, %s293
      %p295 = pneg %p66
      %p296 = pneg %p63
      %p297 = scmp.lt.s32.totalorder %s19, 1
      %s298 = scalar_select %p297, %s19, 1
      %s299 = smul.addr %s298, 8
      %s300 = scalar_lea.vmem %s2, %s299
      %p301 = pneg %p92
      %p302 = pneg %p89
      %p303 = pneg %p113
      %p304 = pneg %p110
      %p305 = pneg %p134
      %p306 = pneg %p131
      %p307 = pneg %p155
      %p308 = pneg %p152
      %p309 = pneg %p176
      %p310 = pneg %p173
      %p311 = pneg %p197
      %p312 = pneg %p194
      %p313 = pneg %p223
      %p314 = pneg %p220
      %p315 = scmp.lt.s32.totalorder %s19, 1
      %s316 = scalar_select %p315, %s19, 1
      %s317 = smul.addr %s316, 8
      %s318 = scalar_lea.vmem %s8, %s317
      %p319 = scmp.lt.s32.totalorder %s19, 1
      %s320 = scalar_select %p319, %s19, 1
      %s321 = smul.addr %s320, 8
      %s322 = scalar_lea.vmem %s0, %s321
      %p323 = scmp.lt.s32.totalorder %s19, 1
      %s324 = scalar_select %p323, %s19, 1
      %s325 = smul.addr %s324, 8
      %s326 = scalar_lea.vmem %s1, %s325
      %p327 = scmp.lt.s32.totalorder %s19, 1
      %s328 = scalar_select %p327, %s19, 1
      %s329 = smul.addr %s328, 8
      %s330 = scalar_lea.vmem %s2, %s329
      %p331 = scmp.lt.s32.totalorder %s19, 1
      %s332 = scalar_select %p331, %s19, 1
      %s333 = smul.addr %s332, 8
      %s334 = scalar_lea.vmem %s8, %s333
      %v335 = vld [vmem:[%s3] sm:$0xff]
      %v336 = vld [vmem:[%s3 + $0x8] sm:$0xff]
      %v337 = vld [vmem:[%s3 + $0x10] sm:$0xff]
      %v338 = vld [vmem:[%s3 + $0x18] sm:$0xff]
      %v339 = vld [vmem:[%s3 + $0x20] sm:$0xff]
      %v340 = vld [vmem:[%s3 + $0x28] sm:$0xff]
      %v341 = vld [vmem:[%s3 + $0x30] sm:$0xff]
      %v342 = vld [vmem:[%s3 + $0x38] sm:$0xff]
      %v343 = vld [vmem:[%s3 + $0x40] sm:$0xff]
      %v344 = vld [vmem:[%s3 + $0x48] sm:$0xff]
      %v345 = vld [vmem:[%s3 + $0x50] sm:$0xff]
      %v346 = vld [vmem:[%s3 + $0x58] sm:$0xff]
      %v347 = vld [vmem:[%s3 + $0x60] sm:$0xff]
      %v348 = vld [vmem:[%s3 + $0x68] sm:$0xff]
      %v349 = vld [vmem:[%s3 + $0x70] sm:$0xff]
      %v350 = vld [vmem:[%s3 + $0x78] sm:$0xff]
      %v351 = vld [vmem:[%s3 + $0x80] sm:$0xff]
      %v352 = vld [vmem:[%s3 + $0x88] sm:$0xff]
      %v353 = vld [vmem:[%s3 + $0x90] sm:$0xff]
      %v354 = vld [vmem:[%s3 + $0x98] sm:$0xff]
      %v355 = vld [vmem:[%s3 + $0xa0] sm:$0xff]
      %v356 = vld [vmem:[%s3 + $0xa8] sm:$0xff]
      %v357 = vld [vmem:[%s3 + $0xb0] sm:$0xff]
      %v358 = vld [vmem:[%s3 + $0xb8] sm:$0xff]
      %v359 = vld [vmem:[%s3 + $0xc0] sm:$0xff]
      %v360 = vld [vmem:[%s3 + $0xc8] sm:$0xff]
      %v361 = vld [vmem:[%s3 + $0xd0] sm:$0xff]
      %v362 = vld [vmem:[%s3 + $0xd8] sm:$0xff]
      %v363 = vld [vmem:[%s3 + $0xe0] sm:$0xff]
      %v364 = vld [vmem:[%s3 + $0xe8] sm:$0xff]
      %v365 = vld [vmem:[%s3 + $0xf0] sm:$0xff]
      %v366 = vld [vmem:[%s3 + $0xf8] sm:$0xff]
      %v367 = vld [vmem:[%s3 + $0x100] sm:$0xff]
      %v368 = vld [vmem:[%s3 + $0x108] sm:$0xff]
      %v369 = vld [vmem:[%s3 + $0x110] sm:$0xff]
      %v370 = vld [vmem:[%s3 + $0x118] sm:$0xff]
      %v371 = vld [vmem:[%s3 + $0x120] sm:$0xff]
      %v372 = vld [vmem:[%s3 + $0x128] sm:$0xff]
      %v373 = vld [vmem:[%s3 + $0x130] sm:$0xff]
      %v374 = vld [vmem:[%s3 + $0x138] sm:$0xff]
      %v375 = vld [vmem:[%s3 + $0x140] sm:$0xff]
      %v376 = vld [vmem:[%s3 + $0x148] sm:$0xff]
      %v377 = vld [vmem:[%s3 + $0x150] sm:$0xff]
      %v378 = vld [vmem:[%s3 + $0x158] sm:$0xff]
      %v379 = vld [vmem:[%s3 + $0x160] sm:$0xff]
      %v380 = vld [vmem:[%s3 + $0x168] sm:$0xff]
      %v381 = vld [vmem:[%s3 + $0x170] sm:$0xff]
      %v382 = vld [vmem:[%s3 + $0x178] sm:$0xff]
      %v383 = vld [vmem:[%s3 + $0x180] sm:$0xff]
      %v384 = vld [vmem:[%s3 + $0x188] sm:$0xff]
      %v385 = vld [vmem:[%s3 + $0x190] sm:$0xff]
      %v386 = vld [vmem:[%s3 + $0x198] sm:$0xff]
      %v387 = vld [vmem:[%s3 + $0x1a0] sm:$0xff]
      %v388 = vld [vmem:[%s3 + $0x1a8] sm:$0xff]
      %v389 = vld [vmem:[%s3 + $0x1b0] sm:$0xff]
      %v390 = vld [vmem:[%s3 + $0x1b8] sm:$0xff]
      %v391 = vld [vmem:[%s3 + $0x1c0] sm:$0xff]
      %v392 = vld [vmem:[%s3 + $0x1c8] sm:$0xff]
      %v393 = vld [vmem:[%s3 + $0x1d0] sm:$0xff]
      %v394 = vld [vmem:[%s3 + $0x1d8] sm:$0xff]
      %v395 = vld [vmem:[%s3 + $0x1e0] sm:$0xff]
      %v396 = vld [vmem:[%s3 + $0x1e8] sm:$0xff]
      %v397 = vld [vmem:[%s3 + $0x1f0] sm:$0xff]
      %v398 = vld [vmem:[%s3 + $0x1f8] sm:$0xff]
      %v399 = vld [vmem:[%s3 + $0x200] sm:$0xff]
      %v400 = vld [vmem:[%s3 + $0x208] sm:$0xff]
      %v401 = vld [vmem:[%s3 + $0x210] sm:$0xff]
      %v402 = vld [vmem:[%s3 + $0x218] sm:$0xff]
      %v403 = vld [vmem:[%s3 + $0x220] sm:$0xff]
      %v404 = vld [vmem:[%s3 + $0x228] sm:$0xff]
      %v405 = vld [vmem:[%s3 + $0x230] sm:$0xff]
      %v406 = vld [vmem:[%s3 + $0x238] sm:$0xff]
      %v407 = vld [vmem:[%s3 + $0x240] sm:$0xff]
      %v408 = vld [vmem:[%s3 + $0x248] sm:$0xff]
      %v409 = vld [vmem:[%s3 + $0x250] sm:$0xff]
      %v410 = vld [vmem:[%s3 + $0x258] sm:$0xff]
      %v411 = vld [vmem:[%s3 + $0x260] sm:$0xff]
      %v412 = vld [vmem:[%s3 + $0x268] sm:$0xff]
      %v413 = vld [vmem:[%s3 + $0x270] sm:$0xff]
      %v414 = vld [vmem:[%s3 + $0x278] sm:$0xff]
      %v415 = vld [vmem:[%s5] sm:$0xff]
      %v416 = vld [vmem:[%s5 + $0x8] sm:$0xff]
      %v417 = vld [vmem:[%s5 + $0x10] sm:$0xff]
      %v418 = vld [vmem:[%s5 + $0x18] sm:$0xff]
      %v419 = vld [vmem:[%s5 + $0x20] sm:$0xff]
      %v420 = vld [vmem:[%s5 + $0x28] sm:$0xff]
      %v421 = vld [vmem:[%s5 + $0x30] sm:$0xff]
      %v422 = vld [vmem:[%s5 + $0x38] sm:$0xff]
      %v423 = vld [vmem:[%s5 + $0x40] sm:$0xff]
      %v424 = vld [vmem:[%s5 + $0x48] sm:$0xff]
      %v425 = vld [vmem:[%s5 + $0x50] sm:$0xff]
      %v426 = vld [vmem:[%s5 + $0x58] sm:$0xff]
      %v427 = vld [vmem:[%s5 + $0x60] sm:$0xff]
      %v428 = vld [vmem:[%s5 + $0x68] sm:$0xff]
      %v429 = vld [vmem:[%s5 + $0x70] sm:$0xff]
      %v430 = vld [vmem:[%s5 + $0x78] sm:$0xff]
      %v431 = vld [vmem:[%s5 + $0x80] sm:$0xff]
      %v432 = vld [vmem:[%s5 + $0x88] sm:$0xff]
      %v433 = vld [vmem:[%s5 + $0x90] sm:$0xff]
      %v434 = vld [vmem:[%s5 + $0x98] sm:$0xff]
      %v435 = vld [vmem:[%s5 + $0xa0] sm:$0xff]
      %v436 = vld [vmem:[%s5 + $0xa8] sm:$0xff]
      %v437 = vld [vmem:[%s5 + $0xb0] sm:$0xff]
      %v438 = vld [vmem:[%s5 + $0xb8] sm:$0xff]
      %v439 = vld [vmem:[%s5 + $0xc0] sm:$0xff]
      %v440 = vld [vmem:[%s5 + $0xc8] sm:$0xff]
      %v441 = vld [vmem:[%s5 + $0xd0] sm:$0xff]
      %v442 = vld [vmem:[%s5 + $0xd8] sm:$0xff]
      %v443 = vld [vmem:[%s5 + $0xe0] sm:$0xff]
      %v444 = vld [vmem:[%s5 + $0xe8] sm:$0xff]
      %v445 = vld [vmem:[%s5 + $0xf0] sm:$0xff]
      %v446 = vld [vmem:[%s5 + $0xf8] sm:$0xff]
      %v447 = vld [vmem:[%s5 + $0x100] sm:$0xff]
      %v448 = vld [vmem:[%s5 + $0x108] sm:$0xff]
      %v449 = vld [vmem:[%s5 + $0x110] sm:$0xff]
      %v450 = vld [vmem:[%s5 + $0x118] sm:$0xff]
      %v451 = vld [vmem:[%s5 + $0x120] sm:$0xff]
      %v452 = vld [vmem:[%s5 + $0x128] sm:$0xff]
      %v453 = vld [vmem:[%s5 + $0x130] sm:$0xff]
      %v454 = vld [vmem:[%s5 + $0x138] sm:$0xff]
      %v455 = vld [vmem:[%s5 + $0x140] sm:$0xff]
      %v456 = vld [vmem:[%s5 + $0x148] sm:$0xff]
      %v457 = vld [vmem:[%s5 + $0x150] sm:$0xff]
      %v458 = vld [vmem:[%s5 + $0x158] sm:$0xff]
      %v459 = vld [vmem:[%s5 + $0x160] sm:$0xff]
      %v460 = vld [vmem:[%s5 + $0x168] sm:$0xff]
      %v461 = vld [vmem:[%s5 + $0x170] sm:$0xff]
      %v462 = vld [vmem:[%s5 + $0x178] sm:$0xff]
      %v463 = vld [vmem:[%s6] sm:$0xff]
      %v464 = vld [vmem:[%s6 + $0x8] sm:$0xff]
      %v465 = vld [vmem:[%s6 + $0x10] sm:$0xff]
      %v466 = vld [vmem:[%s6 + $0x18] sm:$0xff]
      %v467 = vld [vmem:[%s6 + $0x20] sm:$0xff]
      %v468 = vld [vmem:[%s6 + $0x28] sm:$0xff]
      %v469 = vld [vmem:[%s6 + $0x30] sm:$0xff]
      %v470 = vld [vmem:[%s6 + $0x38] sm:$0xff]
      %v471 = vld [vmem:[%s6 + $0x40] sm:$0xff]
      %v472 = vld [vmem:[%s6 + $0x48] sm:$0xff]
      %v473 = vld [vmem:[%s6 + $0x50] sm:$0xff]
      %v474 = vld [vmem:[%s6 + $0x58] sm:$0xff]
      %v475 = vld [vmem:[%s6 + $0x60] sm:$0xff]
      %v476 = vld [vmem:[%s6 + $0x68] sm:$0xff]
      %v477 = vld [vmem:[%s6 + $0x70] sm:$0xff]
      %v478 = vld [vmem:[%s6 + $0x78] sm:$0xff]
      %v479 = vld [vmem:[%s6 + $0x80] sm:$0xff]
      %v480 = vld [vmem:[%s6 + $0x88] sm:$0xff]
      %v481 = vld [vmem:[%s6 + $0x90] sm:$0xff]
      %v482 = vld [vmem:[%s6 + $0x98] sm:$0xff]
      %v483 = vld [vmem:[%s6 + $0xa0] sm:$0xff]
      %v484 = vld [vmem:[%s6 + $0xa8] sm:$0xff]
      %v485 = vld [vmem:[%s6 + $0xb0] sm:$0xff]
      %v486 = vld [vmem:[%s6 + $0xb8] sm:$0xff]
      %v487 = vld [vmem:[%s6 + $0xc0] sm:$0xff]
      %v488 = vld [vmem:[%s6 + $0xc8] sm:$0xff]
      %v489 = vld [vmem:[%s6 + $0xd0] sm:$0xff]
      %v490 = vld [vmem:[%s6 + $0xd8] sm:$0xff]
      %v491 = vld [vmem:[%s6 + $0xe0] sm:$0xff]
      %v492 = vld [vmem:[%s6 + $0xe8] sm:$0xff]
      %v493 = vld [vmem:[%s6 + $0xf0] sm:$0xff]
      %v494 = vld [vmem:[%s6 + $0xf8] sm:$0xff]
      %v495 = vld [vmem:[%s6 + $0x100] sm:$0xff]
      %v496 = vld [vmem:[%s6 + $0x108] sm:$0xff]
      %v497 = vld [vmem:[%s6 + $0x110] sm:$0xff]
      %v498 = vld [vmem:[%s6 + $0x118] sm:$0xff]
      %v499 = vld [vmem:[%s6 + $0x120] sm:$0xff]
      %v500 = vld [vmem:[%s6 + $0x128] sm:$0xff]
      %v501 = vld [vmem:[%s6 + $0x130] sm:$0xff]
      %v502 = vld [vmem:[%s6 + $0x138] sm:$0xff]
      %v503 = vld [vmem:[%s6 + $0x140] sm:$0xff]
      %v504 = vld [vmem:[%s6 + $0x148] sm:$0xff]
      %v505 = vld [vmem:[%s6 + $0x150] sm:$0xff]
      %v506 = vld [vmem:[%s6 + $0x158] sm:$0xff]
      %v507 = vld [vmem:[%s6 + $0x160] sm:$0xff]
      %v508 = vld [vmem:[%s6 + $0x168] sm:$0xff]
      %v509 = vld [vmem:[%s6 + $0x170] sm:$0xff]
      %v510 = vld [vmem:[%s6 + $0x178] sm:$0xff]
      %v511 = vld [vmem:[%s4] sm:$0x1f]
      %v513 = vperm.slane %v511, 0
      %v514 = vperm.slane %v511, 1
      %v515 = vperm.slane %v511, 2
      %v516 = vperm.slane %v511, 3
      %v517 = vperm.slane %v511, 4
      %v523 = vld [vmem:[%s7] sm:$0x7]
      %v525 = vperm.slane %v523, 0
      %v526 = vperm.slane %v523, 1
      %v527 = vperm.slane %v523, 2
      %v531 = vld [vmem:[%s322] sm:$0xff]
      %v532 = vld [vmem:[%s326] sm:$0xff]
      %v533 = vld [vmem:[%s330] sm:$0xff]
      %534 = vmatpush.msra.mxu0 %v410
      %535 = vmatpush.msra.mxu0 %v405
      %536 = vmatpush.msra.mxu0 %v400
      %537 = vmatpush.msra.mxu0 %v395
      %538 = vmatpush.msra.mxu0 %v390
      %539 = vmatpush.msra.mxu0 %v385
      %540 = vmatpush.msra.mxu0 %v380
      %541 = vmatpush.msra.mxu0 %v375
      %542 = vmatpush.msra.mxu0 %v370
      %543 = vmatpush.msra.mxu0 %v365
      %544 = vmatpush.msra.mxu0 %v360
      %545 = vmatpush.msra.mxu0 %v355
      %546 = vmatpush.msra.mxu0 %v350
      %547 = vmatpush.msra.mxu0 %v345
      %548 = vmatpush.msra.mxu0 %v340
      %549 = vmatpush.msra.mxu0 %v335
      %550 = vmatmul.f32.gmra.mxu0 %v533
      %v551 = vpop.f32.mrf.mxu0
      %v552 = vadd.f32 %v513, %v551
      %553 = vdwg.mxu0
      %554 = vmatpush.msra.mxu0 %v411
      %555 = vmatpush.msra.mxu0 %v406
      %556 = vmatpush.msra.mxu0 %v401
      %557 = vmatpush.msra.mxu0 %v396
      %558 = vmatpush.msra.mxu0 %v391
      %559 = vmatpush.msra.mxu0 %v386
      %560 = vmatpush.msra.mxu0 %v381
      %561 = vmatpush.msra.mxu0 %v376
      %562 = vmatpush.msra.mxu0 %v371
      %563 = vmatpush.msra.mxu0 %v366
      %564 = vmatpush.msra.mxu0 %v361
      %565 = vmatpush.msra.mxu0 %v356
      %566 = vmatpush.msra.mxu0 %v351
      %567 = vmatpush.msra.mxu0 %v346
      %568 = vmatpush.msra.mxu0 %v341
      %569 = vmatpush.msra.mxu0 %v336
      %570 = vmatmul.f32.gmra.mxu0 %v533
      %v571 = vpop.f32.mrf.mxu0
      %v572 = vadd.f32 %v514, %v571
      %573 = vdwg.mxu0
      %574 = vmatpush.msra.mxu0 %v412
      %575 = vmatpush.msra.mxu0 %v407
      %576 = vmatpush.msra.mxu0 %v402
      %577 = vmatpush.msra.mxu0 %v397
      %578 = vmatpush.msra.mxu0 %v392
      %579 = vmatpush.msra.mxu0 %v387
      %580 = vmatpush.msra.mxu0 %v382
      %581 = vmatpush.msra.mxu0 %v377
      %582 = vmatpush.msra.mxu0 %v372
      %583 = vmatpush.msra.mxu0 %v367
      %584 = vmatpush.msra.mxu0 %v362
      %585 = vmatpush.msra.mxu0 %v357
      %586 = vmatpush.msra.mxu0 %v352
      %587 = vmatpush.msra.mxu0 %v347
      %588 = vmatpush.msra.mxu0 %v342
      %589 = vmatpush.msra.mxu0 %v337
      %590 = vmatmul.f32.gmra.mxu0 %v533
      %v591 = vpop.f32.mrf.mxu0
      %v592 = vadd.f32 %v515, %v591
      %593 = vdwg.mxu0
      %594 = vmatpush.msra.mxu0 %v413
      %595 = vmatpush.msra.mxu0 %v408
      %596 = vmatpush.msra.mxu0 %v403
      %597 = vmatpush.msra.mxu0 %v398
      %598 = vmatpush.msra.mxu0 %v393
      %599 = vmatpush.msra.mxu0 %v388
      %600 = vmatpush.msra.mxu0 %v383
      %601 = vmatpush.msra.mxu0 %v378
      %602 = vmatpush.msra.mxu0 %v373
      %603 = vmatpush.msra.mxu0 %v368
      %604 = vmatpush.msra.mxu0 %v363
      %605 = vmatpush.msra.mxu0 %v358
      %606 = vmatpush.msra.mxu0 %v353
      %607 = vmatpush.msra.mxu0 %v348
      %608 = vmatpush.msra.mxu0 %v343
      %609 = vmatpush.msra.mxu0 %v338
      %610 = vmatmul.f32.gmra.mxu0 %v533
      %v611 = vpop.f32.mrf.mxu0
      %v612 = vadd.f32 %v516, %v611
      %613 = vdwg.mxu0
      %614 = vmatpush.msra.mxu0 %v414
      %615 = vmatpush.msra.mxu0 %v409
      %616 = vmatpush.msra.mxu0 %v404
      %617 = vmatpush.msra.mxu0 %v399
      %618 = vmatpush.msra.mxu0 %v394
      %619 = vmatpush.msra.mxu0 %v389
      %620 = vmatpush.msra.mxu0 %v384
      %621 = vmatpush.msra.mxu0 %v379
      %622 = vmatpush.msra.mxu0 %v374
      %623 = vmatpush.msra.mxu0 %v369
      %624 = vmatpush.msra.mxu0 %v364
      %625 = vmatpush.msra.mxu0 %v359
      %626 = vmatpush.msra.mxu0 %v354
      %627 = vmatpush.msra.mxu0 %v349
      %628 = vmatpush.msra.mxu0 %v344
      %629 = vmatpush.msra.mxu0 %v339
      %630 = vmatmul.f32.gmra.mxu0 %v533
      %v631 = vpop.f32.mrf.mxu0
      %v632 = vadd.f32 %v517, %v631
      %633 = vdwg.mxu0
      %635 = vset.pattern.permute.xlu0 0
      %636 = vperm.xlu0 %635, %v531
      %v637 = vpop.permute.xlu0 %636
      %v639 = vperm.slane %v552, 0
      %v640 = vmul.f32 %v637, %v639
      %641 = vset.pattern.permute.xlu0 1
      %642 = vperm.xlu0 %641, %v531
      %v643 = vpop.permute.xlu0 %642
      %v645 = vperm.slane %v552, 1
      %v646 = vmul.f32 %v643, %v645
      %v647 = vadd.f32 %v640, %v646
      %648 = vset.pattern.permute.xlu0 2
      %649 = vperm.xlu0 %648, %v531
      %v650 = vpop.permute.xlu0 %649
      %v652 = vperm.slane %v552, 2
      %v653 = vmul.f32 %v650, %v652
      %v654 = vadd.f32 %v647, %v653
      %655 = vset.pattern.permute.xlu0 3
      %656 = vperm.xlu0 %655, %v531
      %v657 = vpop.permute.xlu0 %656
      %v659 = vperm.slane %v552, 3
      %v660 = vmul.f32 %v657, %v659
      %v661 = vadd.f32 %v654, %v660
      %662 = vset.pattern.permute.xlu0 4
      %663 = vperm.xlu0 %662, %v531
      %v664 = vpop.permute.xlu0 %663
      %v666 = vperm.slane %v552, 4
      %v667 = vmul.f32 %v664, %v666
      %v668 = vadd.f32 %v661, %v667
      %669 = vset.pattern.permute.xlu0 5
      %670 = vperm.xlu0 %669, %v531
      %v671 = vpop.permute.xlu0 %670
      %v673 = vperm.slane %v552, 5
      %v674 = vmul.f32 %v671, %v673
      %v675 = vadd.f32 %v668, %v674
      %676 = vset.pattern.permute.xlu0 6
      %677 = vperm.xlu0 %676, %v531
      %v678 = vpop.permute.xlu0 %677
      %v680 = vperm.slane %v552, 6
      %v681 = vmul.f32 %v678, %v680
      %v682 = vadd.f32 %v675, %v681
      %683 = vset.pattern.permute.xlu0 7
      %684 = vperm.xlu0 %683, %v531
      %v685 = vpop.permute.xlu0 %684
      %v687 = vperm.slane %v552, 7
      %v688 = vmul.f32 %v685, %v687
      %v689 = vadd.f32 %v682, %v688
      %691 = vset.pattern.permute.xlu0 0
      %692 = vperm.xlu0 %691, %v532
      %v693 = vpop.permute.xlu0 %692
      %v695 = vperm.slane %v572, 0
      %v696 = vmul.f32 %v693, %v695
      %697 = vset.pattern.permute.xlu0 1
      %698 = vperm.xlu0 %697, %v532
      %v699 = vpop.permute.xlu0 %698
      %v701 = vperm.slane %v572, 1
      %v702 = vmul.f32 %v699, %v701
      %v703 = vadd.f32 %v696, %v702
      %704 = vset.pattern.permute.xlu0 2
      %705 = vperm.xlu0 %704, %v532
      %v706 = vpop.permute.xlu0 %705
      %v708 = vperm.slane %v572, 2
      %v709 = vmul.f32 %v706, %v708
      %v710 = vadd.f32 %v703, %v709
      %711 = vset.pattern.permute.xlu0 3
      %712 = vperm.xlu0 %711, %v532
      %v713 = vpop.permute.xlu0 %712
      %v715 = vperm.slane %v572, 3
      %v716 = vmul.f32 %v713, %v715
      %v717 = vadd.f32 %v710, %v716
      %718 = vset.pattern.permute.xlu0 4
      %719 = vperm.xlu0 %718, %v532
      %v720 = vpop.permute.xlu0 %719
      %v722 = vperm.slane %v572, 4
      %v723 = vmul.f32 %v720, %v722
      %v724 = vadd.f32 %v717, %v723
      %725 = vset.pattern.permute.xlu0 5
      %726 = vperm.xlu0 %725, %v532
      %v727 = vpop.permute.xlu0 %726
      %v729 = vperm.slane %v572, 5
      %v730 = vmul.f32 %v727, %v729
      %v731 = vadd.f32 %v724, %v730
      %732 = vset.pattern.permute.xlu0 6
      %733 = vperm.xlu0 %732, %v532
      %v734 = vpop.permute.xlu0 %733
      %v736 = vperm.slane %v572, 6
      %v737 = vmul.f32 %v734, %v736
      %v738 = vadd.f32 %v731, %v737
      %739 = vset.pattern.permute.xlu0 7
      %740 = vperm.xlu0 %739, %v532
      %v741 = vpop.permute.xlu0 %740
      %v743 = vperm.slane %v572, 7
      %v744 = vmul.f32 %v741, %v743
      %v745 = vadd.f32 %v738, %v744
      %746 = vmatpush.msra.mxu0 %v508
      %747 = vmatpush.msra.mxu0 %v505
      %748 = vmatpush.msra.mxu0 %v502
      %749 = vmatpush.msra.mxu0 %v499
      %750 = vmatpush.msra.mxu0 %v496
      %751 = vmatpush.msra.mxu0 %v493
      %752 = vmatpush.msra.mxu0 %v490
      %753 = vmatpush.msra.mxu0 %v487
      %754 = vmatpush.msra.mxu0 %v484
      %755 = vmatpush.msra.mxu0 %v481
      %756 = vmatpush.msra.mxu0 %v478
      %757 = vmatpush.msra.mxu0 %v475
      %758 = vmatpush.msra.mxu0 %v472
      %759 = vmatpush.msra.mxu0 %v469
      %760 = vmatpush.msra.mxu0 %v466
      %761 = vmatpush.msra.mxu0 %v463
      %762 = vmatmul.f32.gmra.mxu0 %v745
      %v763 = vpop.f32.mrf.mxu0
      %v764 = vadd.f32 0.0, %v763
      %765 = vdwg.mxu0
      %766 = vmatpush.msra.mxu0 %v509
      %767 = vmatpush.msra.mxu0 %v506
      %768 = vmatpush.msra.mxu0 %v503
      %769 = vmatpush.msra.mxu0 %v500
      %770 = vmatpush.msra.mxu0 %v497
      %771 = vmatpush.msra.mxu0 %v494
      %772 = vmatpush.msra.mxu0 %v491
      %773 = vmatpush.msra.mxu0 %v488
      %774 = vmatpush.msra.mxu0 %v485
      %775 = vmatpush.msra.mxu0 %v482
      %776 = vmatpush.msra.mxu0 %v479
      %777 = vmatpush.msra.mxu0 %v476
      %778 = vmatpush.msra.mxu0 %v473
      %779 = vmatpush.msra.mxu0 %v470
      %780 = vmatpush.msra.mxu0 %v467
      %781 = vmatpush.msra.mxu0 %v464
      %782 = vmatmul.f32.gmra.mxu0 %v745
      %v783 = vpop.f32.mrf.mxu0
      %v784 = vadd.f32 0.0, %v783
      %785 = vdwg.mxu0
      %786 = vmatpush.msra.mxu0 %v510
      %787 = vmatpush.msra.mxu0 %v507
      %788 = vmatpush.msra.mxu0 %v504
      %789 = vmatpush.msra.mxu0 %v501
      %790 = vmatpush.msra.mxu0 %v498
      %791 = vmatpush.msra.mxu0 %v495
      %792 = vmatpush.msra.mxu0 %v492
      %793 = vmatpush.msra.mxu0 %v489
      %794 = vmatpush.msra.mxu0 %v486
      %795 = vmatpush.msra.mxu0 %v483
      %796 = vmatpush.msra.mxu0 %v480
      %797 = vmatpush.msra.mxu0 %v477
      %798 = vmatpush.msra.mxu0 %v474
      %799 = vmatpush.msra.mxu0 %v471
      %800 = vmatpush.msra.mxu0 %v468
      %801 = vmatpush.msra.mxu0 %v465
      %802 = vmatmul.f32.gmra.mxu0 %v745
      %v803 = vpop.f32.mrf.mxu0
      %v804 = vadd.f32 0.0, %v803
      %805 = vdwg.mxu0
      %806 = vmatpush.msra.mxu0 %v460
      %807 = vmatpush.msra.mxu0 %v457
      %808 = vmatpush.msra.mxu0 %v454
      %809 = vmatpush.msra.mxu0 %v451
      %810 = vmatpush.msra.mxu0 %v448
      %811 = vmatpush.msra.mxu0 %v445
      %812 = vmatpush.msra.mxu0 %v442
      %813 = vmatpush.msra.mxu0 %v439
      %814 = vmatpush.msra.mxu0 %v436
      %815 = vmatpush.msra.mxu0 %v433
      %816 = vmatpush.msra.mxu0 %v430
      %817 = vmatpush.msra.mxu0 %v427
      %818 = vmatpush.msra.mxu0 %v424
      %819 = vmatpush.msra.mxu0 %v421
      %820 = vmatpush.msra.mxu0 %v418
      %821 = vmatpush.msra.mxu0 %v415
      %822 = vmatmul.f32.gmra.mxu0 %v689
      %v823 = vpop.f32.mrf.mxu0
      %v824 = vadd.f32 %v764, %v823
      %825 = vdwg.mxu0
      %826 = vmatpush.msra.mxu0 %v461
      %827 = vmatpush.msra.mxu0 %v458
      %828 = vmatpush.msra.mxu0 %v455
      %829 = vmatpush.msra.mxu0 %v452
      %830 = vmatpush.msra.mxu0 %v449
      %831 = vmatpush.msra.mxu0 %v446
      %832 = vmatpush.msra.mxu0 %v443
      %833 = vmatpush.msra.mxu0 %v440
      %834 = vmatpush.msra.mxu0 %v437
      %835 = vmatpush.msra.mxu0 %v434
      %836 = vmatpush.msra.mxu0 %v431
      %837 = vmatpush.msra.mxu0 %v428
      %838 = vmatpush.msra.mxu0 %v425
      %839 = vmatpush.msra.mxu0 %v422
      %840 = vmatpush.msra.mxu0 %v419
      %841 = vmatpush.msra.mxu0 %v416
      %842 = vmatmul.f32.gmra.mxu0 %v689
      %v843 = vpop.f32.mrf.mxu0
      %v844 = vadd.f32 %v784, %v843
      %845 = vdwg.mxu0
      %846 = vmatpush.msra.mxu0 %v462
      %847 = vmatpush.msra.mxu0 %v459
      %848 = vmatpush.msra.mxu0 %v456
      %849 = vmatpush.msra.mxu0 %v453
      %850 = vmatpush.msra.mxu0 %v450
      %851 = vmatpush.msra.mxu0 %v447
      %852 = vmatpush.msra.mxu0 %v444
      %853 = vmatpush.msra.mxu0 %v441
      %854 = vmatpush.msra.mxu0 %v438
      %855 = vmatpush.msra.mxu0 %v435
      %856 = vmatpush.msra.mxu0 %v432
      %857 = vmatpush.msra.mxu0 %v429
      %858 = vmatpush.msra.mxu0 %v426
      %859 = vmatpush.msra.mxu0 %v423
      %860 = vmatpush.msra.mxu0 %v420
      %861 = vmatpush.msra.mxu0 %v417
      %862 = vmatmul.f32.gmra.mxu0 %v689
      %v863 = vpop.f32.mrf.mxu0
      %v864 = vadd.f32 %v804, %v863
      %865 = vdwg.mxu0
      %v866 = vadd.f32 %v824, %v525
      %v867 = vadd.f32 %v844, %v526
      %v868 = vadd.f32 %v864, %v527
      %v869 = vadd.f32 %v866, %v592
      %v870 = vxor.u32 %v869, 2147483648
      %v871 = vmul.f32 %v870, 1.442695
      %v872 = vpow.pop %v871
      %v873 = vadd.f32 %v872, 1.0
      %v874 = vrcp.pop %v873
      %v875 = vmul.f32 %v873, %v874
      %v876 = vsub.f32 1.0, %v875
      %v877 = vmul.f32 %v874, %v876
      %v878 = vadd.f32 %v874, %v877
      %vm879 = vweird.f32 %v873
      %vm880 = vweird.f32 %v874
      %vm881 = vmor %vm879, %vm880
      %v882 = vsel %vm881, %v874, %v878
      %v883 = vand.u32 2147483647, %v873
      %vm884 = vcmp.eq.f32.partialorder %v883, 8.507059e+37
      %v885 = vand.u32 %v873, 2147483648
      %v886 = vor.u32 1.1754944e-38, %v885
      %v887 = vsel %vm884, %v886, %v882
      %v888 = vmul.f32 1.0, %v887
      %v889 = vadd.f32 %v867, %v612
      %v890 = vxor.u32 %v889, 2147483648
      %v891 = vmul.f32 %v890, 1.442695
      %v892 = vpow.pop %v891
      %v893 = vadd.f32 %v892, 1.0
      %v894 = vrcp.pop %v893
      %v895 = vmul.f32 %v893, %v894
      %v896 = vsub.f32 1.0, %v895
      %v897 = vmul.f32 %v894, %v896
      %v898 = vadd.f32 %v894, %v897
      %vm899 = vweird.f32 %v893
      %vm900 = vweird.f32 %v894
      %vm901 = vmor %vm899, %vm900
      %v902 = vsel %vm901, %v894, %v898
      %v903 = vand.u32 2147483647, %v893
      %vm904 = vcmp.eq.f32.partialorder %v903, 8.507059e+37
      %v905 = vand.u32 %v893, 2147483648
      %v906 = vor.u32 1.1754944e-38, %v905
      %v907 = vsel %vm904, %v906, %v902
      %v908 = vmul.f32 1.0, %v907
      %v909 = vmul.f32 %v888, %v632
      %v910 = vadd.f32 %v868, %v909
      %v911 = vtanh.pop %v910
      %v912 = vsub.f32 %v533, %v911
      %v913 = vmul.f32 %v908, %v912
      %v914 = vadd.f32 %v911, %v913
      %915 = vmatpush.msra.mxu0 %v410
      %916 = vmatpush.msra.mxu0 %v405
      %917 = vmatpush.msra.mxu0 %v400
      %918 = vmatpush.msra.mxu0 %v395
      %919 = vmatpush.msra.mxu0 %v390
      %920 = vmatpush.msra.mxu0 %v385
      %921 = vmatpush.msra.mxu0 %v380
      %922 = vmatpush.msra.mxu0 %v375
      %923 = vmatpush.msra.mxu0 %v370
      %924 = vmatpush.msra.mxu0 %v365
      %925 = vmatpush.msra.mxu0 %v360
      %926 = vmatpush.msra.mxu0 %v355
      %927 = vmatpush.msra.mxu0 %v350
      %928 = vmatpush.msra.mxu0 %v345
      %929 = vmatpush.msra.mxu0 %v340
      %930 = vmatpush.msra.mxu0 %v335
      %931 = vmatmul.f32.gmra.mxu0 %v914
      %v932 = vpop.f32.mrf.mxu0
      %v933 = vadd.f32 %v513, %v932
      %934 = vdwg.mxu0
      %935 = vmatpush.msra.mxu0 %v411
      %936 = vmatpush.msra.mxu0 %v406
      %937 = vmatpush.msra.mxu0 %v401
      %938 = vmatpush.msra.mxu0 %v396
      %939 = vmatpush.msra.mxu0 %v391
      %940 = vmatpush.msra.mxu0 %v386
      %941 = vmatpush.msra.mxu0 %v381
      %942 = vmatpush.msra.mxu0 %v376
      %943 = vmatpush.msra.mxu0 %v371
      %944 = vmatpush.msra.mxu0 %v366
      %945 = vmatpush.msra.mxu0 %v361
      %946 = vmatpush.msra.mxu0 %v356
      %947 = vmatpush.msra.mxu0 %v351
      %948 = vmatpush.msra.mxu0 %v346
      %949 = vmatpush.msra.mxu0 %v341
      %950 = vmatpush.msra.mxu0 %v336
      %951 = vmatmul.f32.gmra.mxu0 %v914
      %v952 = vpop.f32.mrf.mxu0
      %v953 = vadd.f32 %v514, %v952
      %954 = vdwg.mxu0
      %955 = vmatpush.msra.mxu0 %v412
      %956 = vmatpush.msra.mxu0 %v407
      %957 = vmatpush.msra.mxu0 %v402
      %958 = vmatpush.msra.mxu0 %v397
      %959 = vmatpush.msra.mxu0 %v392
      %960 = vmatpush.msra.mxu0 %v387
      %961 = vmatpush.msra.mxu0 %v382
      %962 = vmatpush.msra.mxu0 %v377
      %963 = vmatpush.msra.mxu0 %v372
      %964 = vmatpush.msra.mxu0 %v367
      %965 = vmatpush.msra.mxu0 %v362
      %966 = vmatpush.msra.mxu0 %v357
      %967 = vmatpush.msra.mxu0 %v352
      %968 = vmatpush.msra.mxu0 %v347
      %969 = vmatpush.msra.mxu0 %v342
      %970 = vmatpush.msra.mxu0 %v337
      %971 = vmatmul.f32.gmra.mxu0 %v914
      %v972 = vpop.f32.mrf.mxu0
      %v973 = vadd.f32 %v515, %v972
      %974 = vdwg.mxu0
      %975 = vmatpush.msra.mxu0 %v413
      %976 = vmatpush.msra.mxu0 %v408
      %977 = vmatpush.msra.mxu0 %v403
      %978 = vmatpush.msra.mxu0 %v398
      %979 = vmatpush.msra.mxu0 %v393
      %980 = vmatpush.msra.mxu0 %v388
      %981 = vmatpush.msra.mxu0 %v383
      %982 = vmatpush.msra.mxu0 %v378
      %983 = vmatpush.msra.mxu0 %v373
      %984 = vmatpush.msra.mxu0 %v368
      %985 = vmatpush.msra.mxu0 %v363
      %986 = vmatpush.msra.mxu0 %v358
      %987 = vmatpush.msra.mxu0 %v353
      %988 = vmatpush.msra.mxu0 %v348
      %989 = vmatpush.msra.mxu0 %v343
      %990 = vmatpush.msra.mxu0 %v338
      %991 = vmatmul.f32.gmra.mxu0 %v914
      %v992 = vpop.f32.mrf.mxu0
      %v993 = vadd.f32 %v516, %v992
      %994 = vdwg.mxu0
      %995 = vmatpush.msra.mxu0 %v414
      %996 = vmatpush.msra.mxu0 %v409
      %997 = vmatpush.msra.mxu0 %v404
      %998 = vmatpush.msra.mxu0 %v399
      %999 = vmatpush.msra.mxu0 %v394
      %1000 = vmatpush.msra.mxu0 %v389
      %1001 = vmatpush.msra.mxu0 %v384
      %1002 = vmatpush.msra.mxu0 %v379
      %1003 = vmatpush.msra.mxu0 %v374
      %1004 = vmatpush.msra.mxu0 %v369
      %1005 = vmatpush.msra.mxu0 %v364
      %1006 = vmatpush.msra.mxu0 %v359
      %1007 = vmatpush.msra.mxu0 %v354
      %1008 = vmatpush.msra.mxu0 %v349
      %1009 = vmatpush.msra.mxu0 %v344
      %1010 = vmatpush.msra.mxu0 %v339
      %1011 = vmatmul.f32.gmra.mxu0 %v914
      %v1012 = vpop.f32.mrf.mxu0
      %v1013 = vadd.f32 %v517, %v1012
      %1014 = vdwg.mxu0
      %v1015 = vperm.slane %v933, 0
      %v1016 = vmul.f32 %v637, %v1015
      %v1017 = vperm.slane %v933, 1
      %v1018 = vmul.f32 %v643, %v1017
      %v1019 = vadd.f32 %v1016, %v1018
      %v1020 = vperm.slane %v933, 2
      %v1021 = vmul.f32 %v650, %v1020
      %v1022 = vadd.f32 %v1019, %v1021
      %v1023 = vperm.slane %v933, 3
      %v1024 = vmul.f32 %v657, %v1023
      %v1025 = vadd.f32 %v1022, %v1024
      %v1026 = vperm.slane %v933, 4
      %v1027 = vmul.f32 %v664, %v1026
      %v1028 = vadd.f32 %v1025, %v1027
      %v1029 = vperm.slane %v933, 5
      %v1030 = vmul.f32 %v671, %v1029
      %v1031 = vadd.f32 %v1028, %v1030
      %v1032 = vperm.slane %v933, 6
      %v1033 = vmul.f32 %v678, %v1032
      %v1034 = vadd.f32 %v1031, %v1033
      %v1035 = vperm.slane %v933, 7
      %v1036 = vmul.f32 %v685, %v1035
      %v1037 = vadd.f32 %v1034, %v1036
      %v1038 = vperm.slane %v953, 0
      %v1039 = vmul.f32 %v693, %v1038
      %v1040 = vperm.slane %v953, 1
      %v1041 = vmul.f32 %v699, %v1040
      %v1042 = vadd.f32 %v1039, %v1041
      %v1043 = vperm.slane %v953, 2
      %v1044 = vmul.f32 %v706, %v1043
      %v1045 = vadd.f32 %v1042, %v1044
      %v1046 = vperm.slane %v953, 3
      %v1047 = vmul.f32 %v713, %v1046
      %v1048 = vadd.f32 %v1045, %v1047
      %v1049 = vperm.slane %v953, 4
      %v1050 = vmul.f32 %v720, %v1049
      %v1051 = vadd.f32 %v1048, %v1050
      %v1052 = vperm.slane %v953, 5
      %v1053 = vmul.f32 %v727, %v1052
      %v1054 = vadd.f32 %v1051, %v1053
      %v1055 = vperm.slane %v953, 6
      %v1056 = vmul.f32 %v734, %v1055
      %v1057 = vadd.f32 %v1054, %v1056
      %v1058 = vperm.slane %v953, 7
      %v1059 = vmul.f32 %v741, %v1058
      %v1060 = vadd.f32 %v1057, %v1059
      %1061 = vmatpush.msra.mxu0 %v508
      %1062 = vmatpush.msra.mxu0 %v505
      %1063 = vmatpush.msra.mxu0 %v502
      %1064 = vmatpush.msra.mxu0 %v499
      %1065 = vmatpush.msra.mxu0 %v496
      %1066 = vmatpush.msra.mxu0 %v493
      %1067 = vmatpush.msra.mxu0 %v490
      %1068 = vmatpush.msra.mxu0 %v487
      %1069 = vmatpush.msra.mxu0 %v484
      %1070 = vmatpush.msra.mxu0 %v481
      %1071 = vmatpush.msra.mxu0 %v478
      %1072 = vmatpush.msra.mxu0 %v475
      %1073 = vmatpush.msra.mxu0 %v472
      %1074 = vmatpush.msra.mxu0 %v469
      %1075 = vmatpush.msra.mxu0 %v466
      %1076 = vmatpush.msra.mxu0 %v463
      %1077 = vmatmul.f32.gmra.mxu0 %v1060
      %v1078 = vpop.f32.mrf.mxu0
      %v1079 = vadd.f32 0.0, %v1078
      %1080 = vdwg.mxu0
      %1081 = vmatpush.msra.mxu0 %v509
      %1082 = vmatpush.msra.mxu0 %v506
      %1083 = vmatpush.msra.mxu0 %v503
      %1084 = vmatpush.msra.mxu0 %v500
      %1085 = vmatpush.msra.mxu0 %v497
      %1086 = vmatpush.msra.mxu0 %v494
      %1087 = vmatpush.msra.mxu0 %v491
      %1088 = vmatpush.msra.mxu0 %v488
      %1089 = vmatpush.msra.mxu0 %v485
      %1090 = vmatpush.msra.mxu0 %v482
      %1091 = vmatpush.msra.mxu0 %v479
      %1092 = vmatpush.msra.mxu0 %v476
      %1093 = vmatpush.msra.mxu0 %v473
      %1094 = vmatpush.msra.mxu0 %v470
      %1095 = vmatpush.msra.mxu0 %v467
      %1096 = vmatpush.msra.mxu0 %v464
      %1097 = vmatmul.f32.gmra.mxu0 %v1060
      %v1098 = vpop.f32.mrf.mxu0
      %v1099 = vadd.f32 0.0, %v1098
      %1100 = vdwg.mxu0
      %1101 = vmatpush.msra.mxu0 %v510
      %1102 = vmatpush.msra.mxu0 %v507
      %1103 = vmatpush.msra.mxu0 %v504
      %1104 = vmatpush.msra.mxu0 %v501
      %1105 = vmatpush.msra.mxu0 %v498
      %1106 = vmatpush.msra.mxu0 %v495
      %1107 = vmatpush.msra.mxu0 %v492
      %1108 = vmatpush.msra.mxu0 %v489
      %1109 = vmatpush.msra.mxu0 %v486
      %1110 = vmatpush.msra.mxu0 %v483
      %1111 = vmatpush.msra.mxu0 %v480
      %1112 = vmatpush.msra.mxu0 %v477
      %1113 = vmatpush.msra.mxu0 %v474
      %1114 = vmatpush.msra.mxu0 %v471
      %1115 = vmatpush.msra.mxu0 %v468
      %1116 = vmatpush.msra.mxu0 %v465
      %1117 = vmatmul.f32.gmra.mxu0 %v1060
      %v1118 = vpop.f32.mrf.mxu0
      %v1119 = vadd.f32 0.0, %v1118
      %1120 = vdwg.mxu0
      %1121 = vmatpush.msra.mxu0 %v460
      %1122 = vmatpush.msra.mxu0 %v457
      %1123 = vmatpush.msra.mxu0 %v454
      %1124 = vmatpush.msra.mxu0 %v451
      %1125 = vmatpush.msra.mxu0 %v448
      %1126 = vmatpush.msra.mxu0 %v445
      %1127 = vmatpush.msra.mxu0 %v442
      %1128 = vmatpush.msra.mxu0 %v439
      %1129 = vmatpush.msra.mxu0 %v436
      %1130 = vmatpush.msra.mxu0 %v433
      %1131 = vmatpush.msra.mxu0 %v430
      %1132 = vmatpush.msra.mxu0 %v427
      %1133 = vmatpush.msra.mxu0 %v424
      %1134 = vmatpush.msra.mxu0 %v421
      %1135 = vmatpush.msra.mxu0 %v418
      %1136 = vmatpush.msra.mxu0 %v415
      %1137 = vmatmul.f32.gmra.mxu0 %v1037
      %v1138 = vpop.f32.mrf.mxu0
      %v1139 = vadd.f32 %v1079, %v1138
      %1140 = vdwg.mxu0
      %1141 = vmatpush.msra.mxu0 %v461
      %1142 = vmatpush.msra.mxu0 %v458
      %1143 = vmatpush.msra.mxu0 %v455
      %1144 = vmatpush.msra.mxu0 %v452
      %1145 = vmatpush.msra.mxu0 %v449
      %1146 = vmatpush.msra.mxu0 %v446
      %1147 = vmatpush.msra.mxu0 %v443
      %1148 = vmatpush.msra.mxu0 %v440
      %1149 = vmatpush.msra.mxu0 %v437
      %1150 = vmatpush.msra.mxu0 %v434
      %1151 = vmatpush.msra.mxu0 %v431
      %1152 = vmatpush.msra.mxu0 %v428
      %1153 = vmatpush.msra.mxu0 %v425
      %1154 = vmatpush.msra.mxu0 %v422
      %1155 = vmatpush.msra.mxu0 %v419
      %1156 = vmatpush.msra.mxu0 %v416
      %1157 = vmatmul.f32.gmra.mxu0 %v1037
      %v1158 = vpop.f32.mrf.mxu0
      %v1159 = vadd.f32 %v1099, %v1158
      %1160 = vdwg.mxu0
      %1161 = vmatpush.msra.mxu0 %v462
      %1162 = vmatpush.msra.mxu0 %v459
      %1163 = vmatpush.msra.mxu0 %v456
      %1164 = vmatpush.msra.mxu0 %v453
      %1165 = vmatpush.msra.mxu0 %v450
      %1166 = vmatpush.msra.mxu0 %v447
      %1167 = vmatpush.msra.mxu0 %v444
      %1168 = vmatpush.msra.mxu0 %v441
      %1169 = vmatpush.msra.mxu0 %v438
      %1170 = vmatpush.msra.mxu0 %v435
      %1171 = vmatpush.msra.mxu0 %v432
      %1172 = vmatpush.msra.mxu0 %v429
      %1173 = vmatpush.msra.mxu0 %v426
      %1174 = vmatpush.msra.mxu0 %v423
      %1175 = vmatpush.msra.mxu0 %v420
      %1176 = vmatpush.msra.mxu0 %v417
      %1177 = vmatmul.f32.gmra.mxu0 %v1037
      %v1178 = vpop.f32.mrf.mxu0
      %v1179 = vadd.f32 %v1119, %v1178
      %1180 = vdwg.mxu0
      %v1181 = vadd.f32 %v1139, %v525
      %v1182 = vadd.f32 %v1159, %v526
      %v1183 = vadd.f32 %v1179, %v527
      %v1184 = vadd.f32 %v1181, %v973
      %v1185 = vxor.u32 %v1184, 2147483648
      %v1186 = vmul.f32 %v1185, 1.442695
      %v1187 = vpow.pop %v1186
      %v1188 = vadd.f32 %v1187, 1.0
      %v1189 = vrcp.pop %v1188
      %v1190 = vmul.f32 %v1188, %v1189
      %v1191 = vsub.f32 1.0, %v1190
      %v1192 = vmul.f32 %v1189, %v1191
      %v1193 = vadd.f32 %v1189, %v1192
      %vm1194 = vweird.f32 %v1188
      %vm1195 = vweird.f32 %v1189
      %vm1196 = vmor %vm1194, %vm1195
      %v1197 = vsel %vm1196, %v1189, %v1193
      %v1198 = vand.u32 2147483647, %v1188
      %vm1199 = vcmp.eq.f32.partialorder %v1198, 8.507059e+37
      %v1200 = vand.u32 %v1188, 2147483648
      %v1201 = vor.u32 1.1754944e-38, %v1200
      %v1202 = vsel %vm1199, %v1201, %v1197
      %v1203 = vmul.f32 1.0, %v1202
      %v1204 = vadd.f32 %v1182, %v993
      %v1205 = vxor.u32 %v1204, 2147483648
      %v1206 = vmul.f32 %v1205, 1.442695
      %v1207 = vpow.pop %v1206
      %v1208 = vadd.f32 %v1207, 1.0
      %v1209 = vrcp.pop %v1208
      %v1210 = vmul.f32 %v1208, %v1209
      %v1211 = vsub.f32 1.0, %v1210
      %v1212 = vmul.f32 %v1209, %v1211
      %v1213 = vadd.f32 %v1209, %v1212
      %vm1214 = vweird.f32 %v1208
      %vm1215 = vweird.f32 %v1209
      %vm1216 = vmor %vm1214, %vm1215
      %v1217 = vsel %vm1216, %v1209, %v1213
      %v1218 = vand.u32 2147483647, %v1208
      %vm1219 = vcmp.eq.f32.partialorder %v1218, 8.507059e+37
      %v1220 = vand.u32 %v1208, 2147483648
      %v1221 = vor.u32 1.1754944e-38, %v1220
      %v1222 = vsel %vm1219, %v1221, %v1217
      %v1223 = vmul.f32 1.0, %v1222
      %v1224 = vmul.f32 %v1203, %v1013
      %v1225 = vadd.f32 %v1183, %v1224
      %v1226 = vtanh.pop %v1225
      %v1227 = vsub.f32 %v914, %v1226
      %v1228 = vmul.f32 %v1223, %v1227
      %v1229 = vadd.f32 %v1226, %v1228
      %1230 = vst [vmem:[%s334] sm:$0xff] %v1229
      %p1231 = scmp.lt.s32.totalorder %s19, 1
      %s1232 = scalar_select %p1231, %s19, 1
      %s1233 = smul.addr %s1232, 8
      %s1234 = scalar_lea.vmem %s8, %s1233
      // Predicated region
      $region53: #{gnn_forward.1} parent=51 // pred_check
        %p1235 = pneg %p220
      $region54: #{gnn_forward.1} parent=51 // pred_check_branch
        %1237 = sbr.rel (%p1235) target = $region56
      $region55: #{gnn_forward.1} parent=51 // pred_region
        _
      $region56: #{gnn_forward.1} parent=51 // pred_fallthru
        _
    $region52: #{gnn_forward.1} parent=5 // pred_fallthru
      _
    %p1238 = scmp.le.s32.totalorder 2, %s14
    // Predicated region
    $region57: #{gnn_forward.1} parent=5 // pred_check
      %p1239 = pneg %p1238
    $region58: #{gnn_forward.1} parent=5 // pred_check_branch
      %1241 = sbr.rel (%p1239) target = $region60
    $region59: #{gnn_forward.1} parent=5 // pred_region
      %s1242 = ssub.s32 %s14, 2
      // Predicated region
      $region61: #{gnn_forward.1} parent=59 // pred_check
        %p1243 = pneg %p226
      $region62: #{gnn_forward.1} parent=59 // pred_check_branch
        %1245 = sbr.rel (%p1243) target = $region64
      $region63: #{gnn_forward.1} parent=59 // pred_region
        %p1246 = scmp.lt.s32.totalorder %s20, 1
        %s1247 = scalar_select %p1246, %s20, 1
        %s1248 = smul.addr %s1247, 8
        %s1249 = scalar_lea.vmem %s8, %s1248
      $region64: #{gnn_forward.1} parent=59 // pred_fallthru
        _
    $region60: #{gnn_forward.1} parent=5 // pred_fallthru
      _
  $region6: #{gnn_forward.1} parent=0 // loop_footer
    %s18 = sadd.s32 1, %s14
  $region7: #{gnn_forward.1} parent=0 // loop_footer_branch
    %13 = sbr.rel target = $region3
  $region8: #{gnn_forward.1} parent=0 // loop_exit
    _

</llo_original>
